<compile_context>
chip_gen: v6e
topology: v6e:2x2x1
jax: 0.10.0
libtpu: 0.0.40
codegen_flags: <defaults>
</compile_context>

<pallas_src>
import math
import functools

import jax
import jax.numpy as jnp
from jax import lax
from jax.experimental import pallas as pl
from jax.experimental.pallas import tpu as pltpu

D_MODEL = 32
N_HEAD = 4
DIM_FF = 64
SEQ = 8
BATCH = 2
LN_EPS = 1e-5


def _layernorm(x, gamma, beta):
    # PyTorch LayerNorm: biased variance over the last dim.
    mu = jnp.mean(x, axis=-1, keepdims=True)
    xc = x - mu
    var = jnp.mean(xc * xc, axis=-1, keepdims=True)
    inv = lax.rsqrt(var + LN_EPS)
    return xc * inv * gamma + beta


def decoder_layer_kernel(
    x_ref,                                   # (N, E)  with N = S*B, rows ordered (s, b)
    wqkv_ref, bqkv_ref,                      # (E, 3E), (1, 3E)   fused QKV (y = x @ W)
    wo_ref, bo_ref,                          # (E, E), (1, E)
    w1_ref, b1_ref,                          # (E, F), (1, F)
    w2_ref,                                  # (F, E)
    g1_ref, be1_ref, g2_ref, be2_ref,        # (1, E) layernorm params
    out_ref,                                 # (N, E)
    *, n_head: int, batch: int,
):
    x = x_ref[...]                           # (N, E)
    N, E = x.shape
    hd = E // n_head
    scale = 1.0 / math.sqrt(hd)

    # ---- fused QKV projection: one MXU push for Q, K and V ----
    qkv = jnp.dot(x, wqkv_ref[...], preferred_element_type=jnp.float32) + bqkv_ref[...]
    q = qkv[:, :E] * scale                   # fold 1/sqrt(hd) into q once
    k = qkv[:, E:2 * E]
    v = qkv[:, 2 * E:]

    # ---- cross-batch attention mask (rows ordered (s, b) => batch id = row % B) ----
    r = lax.broadcasted_iota(jnp.int32, (N, N), 0)
    c = lax.broadcasted_iota(jnp.int32, (N, N), 1)
    if batch & (batch - 1) == 0:             # power-of-two batch: cheap bitwise path
        same = (r & (batch - 1)) == (c & (batch - 1))
    else:
        same = lax.rem(r, batch) == lax.rem(c, batch)
    neg = jnp.where(same, 0.0, -1e30).astype(jnp.float32)

    # ---- attention: one k transpose for all heads, output projection folded in ----
    kT = k.T                                 # (E, N) -- single XLU transpose
    wo = wo_ref[...]                         # (E, E)
    attn_proj = jnp.zeros((N, E), jnp.float32)
    for h in range(n_head):                  # static unroll, tiny trip count
        lo = h * hd
        s = jnp.dot(q[:, lo:lo + hd], kT[lo:lo + hd, :],
                    preferred_element_type=jnp.float32) + neg          # (N, N)
        s = s - jnp.max(s, axis=-1, keepdims=True)
        p = jnp.exp(s)
        p = p * pl.reciprocal(jnp.sum(p, axis=-1, keepdims=True), approx=True)
        o_h = jnp.dot(p, v[:, lo:lo + hd], preferred_element_type=jnp.float32)  # (N, hd)
        # accumulate projected head output instead of concatenating heads
        attn_proj = attn_proj + jnp.dot(o_h, wo[lo:lo + hd, :],
                                        preferred_element_type=jnp.float32)

    # ---- residual + LayerNorm1 ----
    x1 = _layernorm(x + attn_proj + bo_ref[...], g1_ref[...], be1_ref[...])

    # ---- feed-forward + residual + LayerNorm2 ----
    h1 = jnp.dot(x1, w1_ref[...], preferred_element_type=jnp.float32) + b1_ref[...]
    h1 = jnp.maximum(h1, 0.0)
    ff = jnp.dot(h1, w2_ref[...], preferred_element_type=jnp.float32)
    x2 = _layernorm(x1 + ff, g2_ref[...], be2_ref[...])

    out_ref[...] = x2.astype(out_ref.dtype)


def prepare_params(params):
    """One-time weight layout prep (hoisted out of the per-call path)."""
    E = params["out_w"].shape[0]
    F = params["w1"].shape[0]
    return (
        params["in_proj_w"].T,                       # wqkv (E, 3E): columns = [Wq.T|Wk.T|Wv.T]
        params["in_proj_b"].reshape(1, 3 * E),       # bqkv
        params["out_w"].T,                           # wo (E, E)
        params["out_b"].reshape(1, E),               # bo
        params["w1"].T,                              # (E, F)
        params["b1"].reshape(1, F),
        params["w2"].T,                              # (F, E)
        params["g1"].reshape(1, E), params["be1"].reshape(1, E),
        params["g2"].reshape(1, E), params["be2"].reshape(1, E),
    )


@functools.partial(jax.jit, static_argnames=("n_head",))
def decoder_layer(x_sbe, prepped, n_head=N_HEAD):
    """x_sbe: (S, B, E) float32, seq-first like PyTorch nn.MultiheadAttention.
    prepped: output of prepare_params(). Returns (S, B, E)."""
    S, B, E = x_sbe.shape
    assert E % n_head == 0
    N = S * B

    # Row-major reshape only (no transpose, no HBM relayout): rows ordered (s, b).
    x2d = x_sbe.reshape(N, E)

    kernel = functools.partial(decoder_layer_kernel, n_head=n_head, batch=B)

    out = pl.pallas_call(
        kernel,
        out_shape=jax.ShapeDtypeStruct((N, E), jnp.float32),
        grid_spec=pltpu.PrefetchScalarGridSpec(
            num_scalar_prefetch=0,
            grid=(1,),                                        # single step: whole problem in VMEM
            in_specs=[pl.BlockSpec(x2d.shape, lambda i: (0, 0))]
                     + [pl.BlockSpec(w.shape, lambda i: (0, 0)) for w in prepped],
            out_specs=pl.BlockSpec((N, E), lambda i: (0, 0)),
        ),
        compiler_params=pltpu.CompilerParams(dimension_semantics=("arbitrary",)),
    )(x2d, *prepped)

    return out.reshape(S, B, E)                               # free row-major reshape back


def _reference(x_sbe, params, n_head=N_HEAD):
    """Pure-JAX reference of the same forward pass (for a sanity check)."""
    S, B, E = x_sbe.shape
    hd = E // n_head
    x = jnp.transpose(x_sbe, (1, 0, 2))                       # (B, S, E)
    in_w, in_b = params["in_proj_w"], params["in_proj_b"]
    q = x @ in_w[:E].T + in_b[:E]
    k = x @ in_w[E:2 * E].T + in_b[E:2 * E]
    v = x @ in_w[2 * E:].T + in_b[2 * E:]

    def split(t):  # (B, S, E) -> (B, H, S, Dh)
        return t.reshape(B, S, n_head, hd).transpose(0, 2, 1, 3)

    qh, kh, vh = split(q), split(k), split(v)
    s = jnp.einsum("bhqd,bhkd->bhqk", qh, kh) / math.sqrt(hd)
    p = jax.nn.softmax(s, axis=-1)
    a = jnp.einsum("bhqk,bhkd->bhqd", p, vh).transpose(0, 2, 1, 3).reshape(B, S, E)
    a = a @ params["out_w"].T + params["out_b"]

    def ln(t, g, b):
        mu = t.mean(-1, keepdims=True)
        var = ((t - mu) ** 2).mean(-1, keepdims=True)
        return (t - mu) / jnp.sqrt(var + LN_EPS) * g + b

    x1 = ln(x + a, params["g1"], params["be1"])
    ff = jnp.maximum(x1 @ params["w1"].T + params["b1"], 0.0) @ params["w2"].T
    x2 = ln(x1 + ff, params["g2"], params["be2"])
    return jnp.transpose(x2, (1, 0, 2))


def make_params(key, d_model=D_MODEL, dim_ff=DIM_FF):
    ks = jax.random.split(key, 7)
    s = 0.1
    return {
        "in_proj_w": s * jax.random.normal(ks[0], (3 * d_model, d_model), jnp.float32),
        "in_proj_b": s * jax.random.normal(ks[1], (3 * d_model,), jnp.float32),
        "out_w": s * jax.random.normal(ks[2], (d_model, d_model), jnp.float32),
        "out_b": s * jax.random.normal(ks[3], (d_model,), jnp.float32),
        "w1": s * jax.random.normal(ks[4], (dim_ff, d_model), jnp.float32),
        "b1": s * jax.random.normal(ks[5], (dim_ff,), jnp.float32),
        "w2": s * jax.random.normal(ks[6], (d_model, dim_ff), jnp.float32),
        "g1": jnp.ones((d_model,), jnp.float32),
        "be1": jnp.zeros((d_model,), jnp.float32),
        "g2": jnp.ones((d_model,), jnp.float32),
        "be2": jnp.zeros((d_model,), jnp.float32),
    }


if __name__ == "__main__":
    key = jax.random.PRNGKey(0)
    k_x, k_p = jax.random.split(key)
    # (S, B, E) seq-first, like PyTorch nn.MultiheadAttention default.
    x = jax.random.normal(k_x, (SEQ, BATCH, D_MODEL), jnp.float32)
    params = make_params(k_p)
    prepped = prepare_params(params)          # one-time layout prep (amortized to zero)

    out = decoder_layer(x, prepped)
    out = jax.block_until_ready(out)

    ref = _reference(x, params)
    assert out.shape == (SEQ, BATCH, D_MODEL)
    # Tolerance is slightly looser than f32 round-off because the softmax denominator
    # uses the EUP approximate reciprocal (pl.reciprocal(approx=True)).
    assert jnp.allclose(out, ref, atol=2e-3, rtol=2e-3), "mismatch vs JAX reference"

    # TODO(synk): attn_mask / key_padding_mask path not implemented (module is exercised
    # with attn_mask=None); dropout is the identity (rate=0).
    print("KERNEL_OK")
</pallas_src>

<mosaic_0001>
module attributes {stable_mosaic.version = 11 : i64} {
  func.func @decoder_layer_kernel(%arg0: i32, %arg1: memref<16x32xf32, #tpu.memory_space<vmem>>, %arg2: memref<32x96xf32, #tpu.memory_space<vmem>>, %arg3: memref<1x96xf32, #tpu.memory_space<vmem>>, %arg4: memref<32x32xf32, #tpu.memory_space<vmem>>, %arg5: memref<1x32xf32, #tpu.memory_space<vmem>>, %arg6: memref<32x64xf32, #tpu.memory_space<vmem>>, %arg7: memref<1x64xf32, #tpu.memory_space<vmem>>, %arg8: memref<64x32xf32, #tpu.memory_space<vmem>>, %arg9: memref<1x32xf32, #tpu.memory_space<vmem>>, %arg10: memref<1x32xf32, #tpu.memory_space<vmem>>, %arg11: memref<1x32xf32, #tpu.memory_space<vmem>>, %arg12: memref<1x32xf32, #tpu.memory_space<vmem>>, %arg13: memref<16x32xf32, #tpu.memory_space<vmem>>) attributes {dimension_semantics = [#tpu.dimension_semantics<arbitrary>], iteration_bounds = array<i64: 1>, scalar_prefetch = 0 : i64, scratch_operands = 0 : i64, tpu.core_type = #tpu.core_type<tc>, window_params = [{pipeline_mode = #tpu.pipeline_mode<synchronous>, transform_indices = @transform_0, window_bounds = array<i64: 16, 32>}, {pipeline_mode = #tpu.pipeline_mode<synchronous>, transform_indices = @transform_1, window_bounds = array<i64: 32, 96>}, {pipeline_mode = #tpu.pipeline_mode<synchronous>, transform_indices = @transform_2, window_bounds = array<i64: 1, 96>}, {pipeline_mode = #tpu.pipeline_mode<synchronous>, transform_indices = @transform_3, window_bounds = array<i64: 32, 32>}, {pipeline_mode = #tpu.pipeline_mode<synchronous>, transform_indices = @transform_4, window_bounds = array<i64: 1, 32>}, {pipeline_mode = #tpu.pipeline_mode<synchronous>, transform_indices = @transform_5, window_bounds = array<i64: 32, 64>}, {pipeline_mode = #tpu.pipeline_mode<synchronous>, transform_indices = @transform_6, window_bounds = array<i64: 1, 64>}, {pipeline_mode = #tpu.pipeline_mode<synchronous>, transform_indices = @transform_7, window_bounds = array<i64: 64, 32>}, {pipeline_mode = #tpu.pipeline_mode<synchronous>, transform_indices = @transform_8, window_bounds = array<i64: 1, 32>}, {pipeline_mode = #tpu.pipeline_mode<synchronous>, transform_indices = @transform_9, window_bounds = array<i64: 1, 32>}, {pipeline_mode = #tpu.pipeline_mode<synchronous>, transform_indices = @transform_10, window_bounds = array<i64: 1, 32>}, {pipeline_mode = #tpu.pipeline_mode<synchronous>, transform_indices = @transform_11, window_bounds = array<i64: 1, 32>}, {pipeline_mode = #tpu.pipeline_mode<synchronous>, transform_indices = @transform_12, window_bounds = array<i64: 16, 32>}]} {
    %c0 = arith.constant 0 : index
    %c0_0 = arith.constant 0 : index
    %0 = vector.load %arg1[%c0, %c0_0] : memref<16x32xf32, #tpu.memory_space<vmem>>, vector<16x32xf32>
    %c0_1 = arith.constant 0 : index
    %c0_2 = arith.constant 0 : index
    %1 = vector.load %arg2[%c0_1, %c0_2] : memref<32x96xf32, #tpu.memory_space<vmem>>, vector<32x96xf32>
    %cst = arith.constant dense<0.000000e+00> : vector<16x96xf32>
    %2 = tpu.matmul %0, %1, %cst {dimension_numbers = #tpu.dot_dimension_numbers<[1], [0], [0], [1], [0, 0, 1, 1], [], []>} : vector<16x32xf32>, vector<32x96xf32>, vector<16x96xf32> -> vector<16x96xf32>
    %c0_3 = arith.constant 0 : index
    %c0_4 = arith.constant 0 : index
    %3 = vector.load %arg3[%c0_3, %c0_4] : memref<1x96xf32, #tpu.memory_space<vmem>>, vector<1x96xf32>
    %4 = vector.broadcast %3 : vector<1x96xf32> to vector<16x96xf32>
    %5 = arith.addf %2, %4 : vector<16x96xf32>
    %6 = vector.extract_strided_slice %5 {offsets = [0, 0], sizes = [16, 32], strides = [1, 1]} : vector<16x96xf32> to vector<16x32xf32>
    %cst_5 = arith.constant 0.353553385 : f32
    %7 = vector.broadcast %cst_5 : f32 to vector<16x32xf32>
    %8 = arith.mulf %6, %7 : vector<16x32xf32>
    %9 = vector.extract_strided_slice %5 {offsets = [0, 32], sizes = [16, 32], strides = [1, 1]} : vector<16x96xf32> to vector<16x32xf32>
    %10 = vector.extract_strided_slice %5 {offsets = [0, 64], sizes = [16, 32], strides = [1, 1]} : vector<16x96xf32> to vector<16x32xf32>
    %11 = tpu.iota {dimensions = array<i32: 0>} : vector<16x16xi32>
    %12 = tpu.iota {dimensions = array<i32: 1>} : vector<16x16xi32>
    %c1_i32 = arith.constant 1 : i32
    %13 = vector.broadcast %c1_i32 : i32 to vector<16x16xi32>
    %14 = arith.andi %11, %13 : vector<16x16xi32>
    %c1_i32_6 = arith.constant 1 : i32
    %15 = vector.broadcast %c1_i32_6 : i32 to vector<16x16xi32>
    %16 = arith.andi %12, %15 : vector<16x16xi32>
    %17 = arith.cmpi eq, %14, %16 : vector<16x16xi32>
    %cst_7 = arith.constant 0.000000e+00 : f32
    %cst_8 = arith.constant -1.000000e+30 : f32
    %18 = vector.broadcast %cst_7 : f32 to vector<16x16xf32>
    %19 = vector.broadcast %cst_8 : f32 to vector<16x16xf32>
    %20 = arith.select %17, %18, %19 : vector<16x16xi1>, vector<16x16xf32>
    %21 = tpu.transpose %9, [1, 0] : vector<16x32xf32> -> vector<32x16xf32>
    %c0_9 = arith.constant 0 : index
    %c0_10 = arith.constant 0 : index
    %22 = vector.load %arg4[%c0_9, %c0_10] : memref<32x32xf32, #tpu.memory_space<vmem>>, vector<32x32xf32>
    %cst_11 = arith.constant 0.000000e+00 : f32
    %23 = vector.broadcast %cst_11 : f32 to vector<16x32xf32>
    %24 = vector.extract_strided_slice %8 {offsets = [0, 0], sizes = [16, 8], strides = [1, 1]} : vector<16x32xf32> to vector<16x8xf32>
    %25 = vector.extract_strided_slice %21 {offsets = [0, 0], sizes = [8, 16], strides = [1, 1]} : vector<32x16xf32> to vector<8x16xf32>
    %cst_12 = arith.constant dense<0.000000e+00> : vector<16x16xf32>
    %26 = tpu.matmul %24, %25, %cst_12 {dimension_numbers = #tpu.dot_dimension_numbers<[1], [0], [0], [1], [0, 0, 1, 1], [], []>} : vector<16x8xf32>, vector<8x16xf32>, vector<16x16xf32> -> vector<16x16xf32>
    %27 = arith.addf %26, %20 : vector<16x16xf32>
    %cst_13 = arith.constant dense<0xFF800000> : vector<16xf32>
    %28 = vector.multi_reduction <maximumf>, %27, %cst_13 [1] : vector<16x16xf32> to vector<16xf32>
    %29 = vector.shape_cast %28 : vector<16xf32> to vector<16x1xf32>
    %30 = vector.broadcast %29 : vector<16x1xf32> to vector<16x16xf32>
    %31 = arith.subf %27, %30 : vector<16x16xf32>
    %32 = math.exp %31 : vector<16x16xf32>
    %cst_14 = arith.constant dense<0.000000e+00> : vector<16xf32>
    %33 = vector.multi_reduction <add>, %32, %cst_14 [1] : vector<16x16xf32> to vector<16xf32>
    %34 = vector.shape_cast %33 : vector<16xf32> to vector<16x1xf32>
    %35 = tpu.reciprocal %34 {approx = true} : vector<16x1xf32> -> vector<16x1xf32>
    %36 = vector.broadcast %35 : vector<16x1xf32> to vector<16x16xf32>
    %37 = arith.mulf %32, %36 : vector<16x16xf32>
    %38 = vector.extract_strided_slice %10 {offsets = [0, 0], sizes = [16, 8], strides = [1, 1]} : vector<16x32xf32> to vector<16x8xf32>
    %cst_15 = arith.constant dense<0.000000e+00> : vector<16x8xf32>
    %39 = tpu.matmul %37, %38, %cst_15 {dimension_numbers = #tpu.dot_dimension_numbers<[1], [0], [0], [1], [0, 0, 1, 1], [], []>} : vector<16x16xf32>, vector<16x8xf32>, vector<16x8xf32> -> vector<16x8xf32>
    %40 = vector.extract_strided_slice %22 {offsets = [0, 0], sizes = [8, 32], strides = [1, 1]} : vector<32x32xf32> to vector<8x32xf32>
    %cst_16 = arith.constant dense<0.000000e+00> : vector<16x32xf32>
    %41 = tpu.matmul %39, %40, %cst_16 {dimension_numbers = #tpu.dot_dimension_numbers<[1], [0], [0], [1], [0, 0, 1, 1], [], []>} : vector<16x8xf32>, vector<8x32xf32>, vector<16x32xf32> -> vector<16x32xf32>
    %42 = arith.addf %23, %41 : vector<16x32xf32>
    %43 = vector.extract_strided_slice %8 {offsets = [0, 8], sizes = [16, 8], strides = [1, 1]} : vector<16x32xf32> to vector<16x8xf32>
    %44 = vector.extract_strided_slice %21 {offsets = [8, 0], sizes = [8, 16], strides = [1, 1]} : vector<32x16xf32> to vector<8x16xf32>
    %cst_17 = arith.constant dense<0.000000e+00> : vector<16x16xf32>
    %45 = tpu.matmul %43, %44, %cst_17 {dimension_numbers = #tpu.dot_dimension_numbers<[1], [0], [0], [1], [0, 0, 1, 1], [], []>} : vector<16x8xf32>, vector<8x16xf32>, vector<16x16xf32> -> vector<16x16xf32>
    %46 = arith.addf %45, %20 : vector<16x16xf32>
    %cst_18 = arith.constant dense<0xFF800000> : vector<16xf32>
    %47 = vector.multi_reduction <maximumf>, %46, %cst_18 [1] : vector<16x16xf32> to vector<16xf32>
    %48 = vector.shape_cast %47 : vector<16xf32> to vector<16x1xf32>
    %49 = vector.broadcast %48 : vector<16x1xf32> to vector<16x16xf32>
    %50 = arith.subf %46, %49 : vector<16x16xf32>
    %51 = math.exp %50 : vector<16x16xf32>
    %cst_19 = arith.constant dense<0.000000e+00> : vector<16xf32>
    %52 = vector.multi_reduction <add>, %51, %cst_19 [1] : vector<16x16xf32> to vector<16xf32>
    %53 = vector.shape_cast %52 : vector<16xf32> to vector<16x1xf32>
    %54 = tpu.reciprocal %53 {approx = true} : vector<16x1xf32> -> vector<16x1xf32>
    %55 = vector.broadcast %54 : vector<16x1xf32> to vector<16x16xf32>
    %56 = arith.mulf %51, %55 : vector<16x16xf32>
    %57 = vector.extract_strided_slice %10 {offsets = [0, 8], sizes = [16, 8], strides = [1, 1]} : vector<16x32xf32> to vector<16x8xf32>
    %cst_20 = arith.constant dense<0.000000e+00> : vector<16x8xf32>
    %58 = tpu.matmul %56, %57, %cst_20 {dimension_numbers = #tpu.dot_dimension_numbers<[1], [0], [0], [1], [0, 0, 1, 1], [], []>} : vector<16x16xf32>, vector<16x8xf32>, vector<16x8xf32> -> vector<16x8xf32>
    %59 = vector.extract_strided_slice %22 {offsets = [8, 0], sizes = [8, 32], strides = [1, 1]} : vector<32x32xf32> to vector<8x32xf32>
    %cst_21 = arith.constant dense<0.000000e+00> : vector<16x32xf32>
    %60 = tpu.matmul %58, %59, %cst_21 {dimension_numbers = #tpu.dot_dimension_numbers<[1], [0], [0], [1], [0, 0, 1, 1], [], []>} : vector<16x8xf32>, vector<8x32xf32>, vector<16x32xf32> -> vector<16x32xf32>
    %61 = arith.addf %42, %60 : vector<16x32xf32>
    %62 = vector.extract_strided_slice %8 {offsets = [0, 16], sizes = [16, 8], strides = [1, 1]} : vector<16x32xf32> to vector<16x8xf32>
    %63 = vector.extract_strided_slice %21 {offsets = [16, 0], sizes = [8, 16], strides = [1, 1]} : vector<32x16xf32> to vector<8x16xf32>
    %cst_22 = arith.constant dense<0.000000e+00> : vector<16x16xf32>
    %64 = tpu.matmul %62, %63, %cst_22 {dimension_numbers = #tpu.dot_dimension_numbers<[1], [0], [0], [1], [0, 0, 1, 1], [], []>} : vector<16x8xf32>, vector<8x16xf32>, vector<16x16xf32> -> vector<16x16xf32>
    %65 = arith.addf %64, %20 : vector<16x16xf32>
    %cst_23 = arith.constant dense<0xFF800000> : vector<16xf32>
    %66 = vector.multi_reduction <maximumf>, %65, %cst_23 [1] : vector<16x16xf32> to vector<16xf32>
    %67 = vector.shape_cast %66 : vector<16xf32> to vector<16x1xf32>
    %68 = vector.broadcast %67 : vector<16x1xf32> to vector<16x16xf32>
    %69 = arith.subf %65, %68 : vector<16x16xf32>
    %70 = math.exp %69 : vector<16x16xf32>
    %cst_24 = arith.constant dense<0.000000e+00> : vector<16xf32>
    %71 = vector.multi_reduction <add>, %70, %cst_24 [1] : vector<16x16xf32> to vector<16xf32>
    %72 = vector.shape_cast %71 : vector<16xf32> to vector<16x1xf32>
    %73 = tpu.reciprocal %72 {approx = true} : vector<16x1xf32> -> vector<16x1xf32>
    %74 = vector.broadcast %73 : vector<16x1xf32> to vector<16x16xf32>
    %75 = arith.mulf %70, %74 : vector<16x16xf32>
    %76 = vector.extract_strided_slice %10 {offsets = [0, 16], sizes = [16, 8], strides = [1, 1]} : vector<16x32xf32> to vector<16x8xf32>
    %cst_25 = arith.constant dense<0.000000e+00> : vector<16x8xf32>
    %77 = tpu.matmul %75, %76, %cst_25 {dimension_numbers = #tpu.dot_dimension_numbers<[1], [0], [0], [1], [0, 0, 1, 1], [], []>} : vector<16x16xf32>, vector<16x8xf32>, vector<16x8xf32> -> vector<16x8xf32>
    %78 = vector.extract_strided_slice %22 {offsets = [16, 0], sizes = [8, 32], strides = [1, 1]} : vector<32x32xf32> to vector<8x32xf32>
    %cst_26 = arith.constant dense<0.000000e+00> : vector<16x32xf32>
    %79 = tpu.matmul %77, %78, %cst_26 {dimension_numbers = #tpu.dot_dimension_numbers<[1], [0], [0], [1], [0, 0, 1, 1], [], []>} : vector<16x8xf32>, vector<8x32xf32>, vector<16x32xf32> -> vector<16x32xf32>
    %80 = arith.addf %61, %79 : vector<16x32xf32>
    %81 = vector.extract_strided_slice %8 {offsets = [0, 24], sizes = [16, 8], strides = [1, 1]} : vector<16x32xf32> to vector<16x8xf32>
    %82 = vector.extract_strided_slice %21 {offsets = [24, 0], sizes = [8, 16], strides = [1, 1]} : vector<32x16xf32> to vector<8x16xf32>
    %cst_27 = arith.constant dense<0.000000e+00> : vector<16x16xf32>
    %83 = tpu.matmul %81, %82, %cst_27 {dimension_numbers = #tpu.dot_dimension_numbers<[1], [0], [0], [1], [0, 0, 1, 1], [], []>} : vector<16x8xf32>, vector<8x16xf32>, vector<16x16xf32> -> vector<16x16xf32>
    %84 = arith.addf %83, %20 : vector<16x16xf32>
    %cst_28 = arith.constant dense<0xFF800000> : vector<16xf32>
    %85 = vector.multi_reduction <maximumf>, %84, %cst_28 [1] : vector<16x16xf32> to vector<16xf32>
    %86 = vector.shape_cast %85 : vector<16xf32> to vector<16x1xf32>
    %87 = vector.broadcast %86 : vector<16x1xf32> to vector<16x16xf32>
    %88 = arith.subf %84, %87 : vector<16x16xf32>
    %89 = math.exp %88 : vector<16x16xf32>
    %cst_29 = arith.constant dense<0.000000e+00> : vector<16xf32>
    %90 = vector.multi_reduction <add>, %89, %cst_29 [1] : vector<16x16xf32> to vector<16xf32>
    %91 = vector.shape_cast %90 : vector<16xf32> to vector<16x1xf32>
    %92 = tpu.reciprocal %91 {approx = true} : vector<16x1xf32> -> vector<16x1xf32>
    %93 = vector.broadcast %92 : vector<16x1xf32> to vector<16x16xf32>
    %94 = arith.mulf %89, %93 : vector<16x16xf32>
    %95 = vector.extract_strided_slice %10 {offsets = [0, 24], sizes = [16, 8], strides = [1, 1]} : vector<16x32xf32> to vector<16x8xf32>
    %cst_30 = arith.constant dense<0.000000e+00> : vector<16x8xf32>
    %96 = tpu.matmul %94, %95, %cst_30 {dimension_numbers = #tpu.dot_dimension_numbers<[1], [0], [0], [1], [0, 0, 1, 1], [], []>} : vector<16x16xf32>, vector<16x8xf32>, vector<16x8xf32> -> vector<16x8xf32>
    %97 = vector.extract_strided_slice %22 {offsets = [24, 0], sizes = [8, 32], strides = [1, 1]} : vector<32x32xf32> to vector<8x32xf32>
    %cst_31 = arith.constant dense<0.000000e+00> : vector<16x32xf32>
    %98 = tpu.matmul %96, %97, %cst_31 {dimension_numbers = #tpu.dot_dimension_numbers<[1], [0], [0], [1], [0, 0, 1, 1], [], []>} : vector<16x8xf32>, vector<8x32xf32>, vector<16x32xf32> -> vector<16x32xf32>
    %99 = arith.addf %80, %98 : vector<16x32xf32>
    %100 = arith.addf %0, %99 : vector<16x32xf32>
    %c0_32 = arith.constant 0 : index
    %c0_33 = arith.constant 0 : index
    %101 = vector.load %arg5[%c0_32, %c0_33] : memref<1x32xf32, #tpu.memory_space<vmem>>, vector<1x32xf32>
    %102 = vector.broadcast %101 : vector<1x32xf32> to vector<16x32xf32>
    %103 = arith.addf %100, %102 : vector<16x32xf32>
    %c0_34 = arith.constant 0 : index
    %c0_35 = arith.constant 0 : index
    %104 = vector.load %arg9[%c0_34, %c0_35] : memref<1x32xf32, #tpu.memory_space<vmem>>, vector<1x32xf32>
    %c0_36 = arith.constant 0 : index
    %c0_37 = arith.constant 0 : index
    %105 = vector.load %arg10[%c0_36, %c0_37] : memref<1x32xf32, #tpu.memory_space<vmem>>, vector<1x32xf32>
    %cst_38 = arith.constant dense<0.000000e+00> : vector<16xf32>
    %106 = vector.multi_reduction <add>, %103, %cst_38 [1] : vector<16x32xf32> to vector<16xf32>
    %107 = vector.shape_cast %106 : vector<16xf32> to vector<16x1xf32>
    %cst_39 = arith.constant 3.200000e+01 : f32
    %108 = vector.broadcast %cst_39 : f32 to vector<16x1xf32>
    %109 = arith.divf %107, %108 : vector<16x1xf32>
    %110 = vector.broadcast %109 : vector<16x1xf32> to vector<16x32xf32>
    %111 = arith.subf %103, %110 : vector<16x32xf32>
    %112 = arith.mulf %111, %111 : vector<16x32xf32>
    %cst_40 = arith.constant dense<0.000000e+00> : vector<16xf32>
    %113 = vector.multi_reduction <add>, %112, %cst_40 [1] : vector<16x32xf32> to vector<16xf32>
    %114 = vector.shape_cast %113 : vector<16xf32> to vector<16x1xf32>
    %cst_41 = arith.constant 3.200000e+01 : f32
    %115 = vector.broadcast %cst_41 : f32 to vector<16x1xf32>
    %116 = arith.divf %114, %115 : vector<16x1xf32>
    %cst_42 = arith.constant 9.99999974E-6 : f32
    %117 = vector.broadcast %cst_42 : f32 to vector<16x1xf32>
    %118 = arith.addf %116, %117 : vector<16x1xf32>
    %119 = math.rsqrt %118 : vector<16x1xf32>
    %120 = vector.broadcast %119 : vector<16x1xf32> to vector<16x32xf32>
    %121 = arith.mulf %111, %120 : vector<16x32xf32>
    %122 = vector.broadcast %104 : vector<1x32xf32> to vector<16x32xf32>
    %123 = arith.mulf %121, %122 : vector<16x32xf32>
    %124 = vector.broadcast %105 : vector<1x32xf32> to vector<16x32xf32>
    %125 = arith.addf %123, %124 : vector<16x32xf32>
    %c0_43 = arith.constant 0 : index
    %c0_44 = arith.constant 0 : index
    %126 = vector.load %arg6[%c0_43, %c0_44] : memref<32x64xf32, #tpu.memory_space<vmem>>, vector<32x64xf32>
    %cst_45 = arith.constant dense<0.000000e+00> : vector<16x64xf32>
    %127 = tpu.matmul %125, %126, %cst_45 {dimension_numbers = #tpu.dot_dimension_numbers<[1], [0], [0], [1], [0, 0, 1, 1], [], []>} : vector<16x32xf32>, vector<32x64xf32>, vector<16x64xf32> -> vector<16x64xf32>
    %c0_46 = arith.constant 0 : index
    %c0_47 = arith.constant 0 : index
    %128 = vector.load %arg7[%c0_46, %c0_47] : memref<1x64xf32, #tpu.memory_space<vmem>>, vector<1x64xf32>
    %129 = vector.broadcast %128 : vector<1x64xf32> to vector<16x64xf32>
    %130 = arith.addf %127, %129 : vector<16x64xf32>
    %cst_48 = arith.constant 0.000000e+00 : f32
    %131 = vector.broadcast %cst_48 : f32 to vector<16x64xf32>
    %132 = arith.maximumf %130, %131 : vector<16x64xf32>
    %c0_49 = arith.constant 0 : index
    %c0_50 = arith.constant 0 : index
    %133 = vector.load %arg8[%c0_49, %c0_50] : memref<64x32xf32, #tpu.memory_space<vmem>>, vector<64x32xf32>
    %cst_51 = arith.constant dense<0.000000e+00> : vector<16x32xf32>
    %134 = tpu.matmul %132, %133, %cst_51 {dimension_numbers = #tpu.dot_dimension_numbers<[1], [0], [0], [1], [0, 0, 1, 1], [], []>} : vector<16x64xf32>, vector<64x32xf32>, vector<16x32xf32> -> vector<16x32xf32>
    %135 = arith.addf %125, %134 : vector<16x32xf32>
    %c0_52 = arith.constant 0 : index
    %c0_53 = arith.constant 0 : index
    %136 = vector.load %arg11[%c0_52, %c0_53] : memref<1x32xf32, #tpu.memory_space<vmem>>, vector<1x32xf32>
    %c0_54 = arith.constant 0 : index
    %c0_55 = arith.constant 0 : index
    %137 = vector.load %arg12[%c0_54, %c0_55] : memref<1x32xf32, #tpu.memory_space<vmem>>, vector<1x32xf32>
    %cst_56 = arith.constant dense<0.000000e+00> : vector<16xf32>
    %138 = vector.multi_reduction <add>, %135, %cst_56 [1] : vector<16x32xf32> to vector<16xf32>
    %139 = vector.shape_cast %138 : vector<16xf32> to vector<16x1xf32>
    %cst_57 = arith.constant 3.200000e+01 : f32
    %140 = vector.broadcast %cst_57 : f32 to vector<16x1xf32>
    %141 = arith.divf %139, %140 : vector<16x1xf32>
    %142 = vector.broadcast %141 : vector<16x1xf32> to vector<16x32xf32>
    %143 = arith.subf %135, %142 : vector<16x32xf32>
    %144 = arith.mulf %143, %143 : vector<16x32xf32>
    %cst_58 = arith.constant dense<0.000000e+00> : vector<16xf32>
    %145 = vector.multi_reduction <add>, %144, %cst_58 [1] : vector<16x32xf32> to vector<16xf32>
    %146 = vector.shape_cast %145 : vector<16xf32> to vector<16x1xf32>
    %cst_59 = arith.constant 3.200000e+01 : f32
    %147 = vector.broadcast %cst_59 : f32 to vector<16x1xf32>
    %148 = arith.divf %146, %147 : vector<16x1xf32>
    %cst_60 = arith.constant 9.99999974E-6 : f32
    %149 = vector.broadcast %cst_60 : f32 to vector<16x1xf32>
    %150 = arith.addf %148, %149 : vector<16x1xf32>
    %151 = math.rsqrt %150 : vector<16x1xf32>
    %152 = vector.broadcast %151 : vector<16x1xf32> to vector<16x32xf32>
    %153 = arith.mulf %143, %152 : vector<16x32xf32>
    %154 = vector.broadcast %136 : vector<1x32xf32> to vector<16x32xf32>
    %155 = arith.mulf %153, %154 : vector<16x32xf32>
    %156 = vector.broadcast %137 : vector<1x32xf32> to vector<16x32xf32>
    %157 = arith.addf %155, %156 : vector<16x32xf32>
    %c0_61 = arith.constant 0 : index
    %c0_62 = arith.constant 0 : index
    %158 = vector.load %arg13[%c0_61, %c0_62] : memref<16x32xf32, #tpu.memory_space<vmem>>, vector<16x32xf32>
    tpu.vector_store %arg13[%c0_61, %c0_62], %157 {strides = array<i32>} : memref<16x32xf32, #tpu.memory_space<vmem>>, vector<16x32xf32>,
    return
  }
  func.func @transform_0(%arg0: i32) -> (i32, i32) {
    %c0_i32 = arith.constant 0 : i32
    %c0_i32_0 = arith.constant 0 : i32
    %c0_i32_1 = arith.constant 0 : i32
    return %c0_i32, %c0_i32_0 : i32, i32
  }
  func.func @transform_1(%arg0: i32) -> (i32, i32) {
    %c0_i32 = arith.constant 0 : i32
    %c0_i32_0 = arith.constant 0 : i32
    %c0_i32_1 = arith.constant 0 : i32
    return %c0_i32, %c0_i32_0 : i32, i32
  }
  func.func @transform_2(%arg0: i32) -> (i32, i32) {
    %c0_i32 = arith.constant 0 : i32
    %c0_i32_0 = arith.constant 0 : i32
    %c0_i32_1 = arith.constant 0 : i32
    return %c0_i32, %c0_i32_0 : i32, i32
  }
  func.func @transform_3(%arg0: i32) -> (i32, i32) {
    %c0_i32 = arith.constant 0 : i32
    %c0_i32_0 = arith.constant 0 : i32
    %c0_i32_1 = arith.constant 0 : i32
    return %c0_i32, %c0_i32_0 : i32, i32
  }
  func.func @transform_4(%arg0: i32) -> (i32, i32) {
    %c0_i32 = arith.constant 0 : i32
    %c0_i32_0 = arith.constant 0 : i32
    %c0_i32_1 = arith.constant 0 : i32
    return %c0_i32, %c0_i32_0 : i32, i32
  }
  func.func @transform_5(%arg0: i32) -> (i32, i32) {
    %c0_i32 = arith.constant 0 : i32
    %c0_i32_0 = arith.constant 0 : i32
    %c0_i32_1 = arith.constant 0 : i32
    return %c0_i32, %c0_i32_0 : i32, i32
  }
  func.func @transform_6(%arg0: i32) -> (i32, i32) {
    %c0_i32 = arith.constant 0 : i32
    %c0_i32_0 = arith.constant 0 : i32
    %c0_i32_1 = arith.constant 0 : i32
    return %c0_i32, %c0_i32_0 : i32, i32
  }
  func.func @transform_7(%arg0: i32) -> (i32, i32) {
    %c0_i32 = arith.constant 0 : i32
    %c0_i32_0 = arith.constant 0 : i32
    %c0_i32_1 = arith.constant 0 : i32
    return %c0_i32, %c0_i32_0 : i32, i32
  }
  func.func @transform_8(%arg0: i32) -> (i32, i32) {
    %c0_i32 = arith.constant 0 : i32
    %c0_i32_0 = arith.constant 0 : i32
    %c0_i32_1 = arith.constant 0 : i32
    return %c0_i32, %c0_i32_0 : i32, i32
  }
  func.func @transform_9(%arg0: i32) -> (i32, i32) {
    %c0_i32 = arith.constant 0 : i32
    %c0_i32_0 = arith.constant 0 : i32
    %c0_i32_1 = arith.constant 0 : i32
    return %c0_i32, %c0_i32_0 : i32, i32
  }
  func.func @transform_10(%arg0: i32) -> (i32, i32) {
    %c0_i32 = arith.constant 0 : i32
    %c0_i32_0 = arith.constant 0 : i32
    %c0_i32_1 = arith.constant 0 : i32
    return %c0_i32, %c0_i32_0 : i32, i32
  }
  func.func @transform_11(%arg0: i32) -> (i32, i32) {
    %c0_i32 = arith.constant 0 : i32
    %c0_i32_0 = arith.constant 0 : i32
    %c0_i32_1 = arith.constant 0 : i32
    return %c0_i32, %c0_i32_0 : i32, i32
  }
  func.func @transform_12(%arg0: i32) -> (i32, i32) {
    %c0_i32 = arith.constant 0 : i32
    %c0_i32_0 = arith.constant 0 : i32
    %c0_i32_1 = arith.constant 0 : i32
    return %c0_i32, %c0_i32_0 : i32, i32
  }
}

</mosaic_0001>

<llo_original>
// kernel: decoder_layer.1
$region0: #{decoder_layer.1}
  #allocation0 [shape = 'u32[]', space=smem, size = 0x4, offset = 0x4, fixed_abs, tag = 'smem constant byte address 0x4 - core index']
  #allocation1 [shape = 'u32[144,128]{1,0:T(1,128)}', space=vmem, size = 0x12000, scoped, tag = 'internal scratch']
  %s0 = inlined_call_operand.hbm [shape: f32[16,32], index: 0, kind: input, shape index: {}]
  %s1 = inlined_call_operand.vmem [shape: f32[32,96], index: 1, kind: input, shape index: {}]
  %s2 = inlined_call_operand.vmem [shape: f32[1,96], index: 2, kind: input, shape index: {}]
  %s3 = inlined_call_operand.vmem [shape: f32[32,32], index: 3, kind: input, shape index: {}]
  %s4 = inlined_call_operand.vmem [shape: f32[1,32], index: 4, kind: input, shape index: {}]
  %s5 = inlined_call_operand.vmem [shape: f32[32,64], index: 5, kind: input, shape index: {}]
  %s6 = inlined_call_operand.vmem [shape: f32[1,64], index: 6, kind: input, shape index: {}]
  %s7 = inlined_call_operand.vmem [shape: f32[64,32], index: 7, kind: input, shape index: {}]
  %s8 = inlined_call_operand.vmem [shape: f32[1,32], index: 8, kind: input, shape index: {}]
  %s9 = inlined_call_operand.vmem [shape: f32[1,32], index: 9, kind: input, shape index: {}]
  %s10 = inlined_call_operand.vmem [shape: f32[1,32], index: 10, kind: input, shape index: {}]
  %s11 = inlined_call_operand.vmem [shape: f32[1,32], index: 11, kind: input, shape index: {}]
  %s12 = inlined_call_operand.hbm [shape: f32[16,32], index: 12, kind: output, shape index: {}]
  %s13 = sld [smem:[#allocation0]]
  $region62: #{decoder_layer.1} parent=0
    _
  %s15 = ssub.s32 1, %s13
  %s16 = scalar_select 0, %s15, %s13
  $region1: #{decoder_layer.1} parent=0
    #allocation2 [shape = 'u8[8192]{0}', space=vmem, size = 0x2000, scoped, tag = 'input window, operand 0, single buffered']
    #allocation3 [shape = 's32[1]{0}', space=sflag, size = 0x4, scoped, tag = 'scoped memory for decoder_layer.1']
    #allocation4 [shape = 's32[1]{0}', space=sflag, size = 0x4, scoped, tag = 'scoped memory for decoder_layer.1']
    #allocation5 [shape = 'u8[8192]{0}', space=vmem, size = 0x2000, scoped, tag = 'output window, operand 0, single buffered']
    %17 = vsyncpa [#allocation3], 0
    %18 = vsyncpa [#allocation4], 0
    // Predicated region
    $region2: #{decoder_layer.1} parent=1 // pred_check
      _
    $region3: #{decoder_layer.1} parent=1 // pred_check_branch
      %20 = sbr.rel (0) target = $region5
    $region4: #{decoder_layer.1} parent=1 // pred_region
      %s22 = ssub.s32 256, 256
      %23 = vsyncadd [#allocation3], %s22
      %s24 = sshll.u32 [#allocation2], 4
      %s25 = int_to_ptr.vmem [resolvable:$true] %s24
      %30 = dma.hbm_to_vmem [thread:$0]  %s0, 256, %s25, [#allocation3], 128, 128, 8
    $region5: #{decoder_layer.1} parent=1 // pred_fallthru
      _
    // Predicated region
    $region6: #{decoder_layer.1} parent=1 // pred_check
      _
    $region7: #{decoder_layer.1} parent=1 // pred_check_branch
      %32 = sbr.rel (0) target = $region9
    $region8: #{decoder_layer.1} parent=1 // pred_region
      _
    $region9: #{decoder_layer.1} parent=1 // pred_fallthru
      _
    // Predicated region
    $region10: #{decoder_layer.1} parent=1 // pred_check
      _
    $region11: #{decoder_layer.1} parent=1 // pred_check_branch
      %34 = sbr.rel (0) target = $region13
    $region12: #{decoder_layer.1} parent=1 // pred_region
      _
    $region13: #{decoder_layer.1} parent=1 // pred_fallthru
      _
    // Predicated region
    $region14: #{decoder_layer.1} parent=1 // pred_check
      _
    $region15: #{decoder_layer.1} parent=1 // pred_check_branch
      %36 = sbr.rel (0) target = $region17
    $region16: #{decoder_layer.1} parent=1 // pred_region
      _
    $region17: #{decoder_layer.1} parent=1 // pred_fallthru
      _
    // Predicated region
    $region18: #{decoder_layer.1} parent=1 // pred_check
      _
    $region19: #{decoder_layer.1} parent=1 // pred_check_branch
      %38 = sbr.rel (0) target = $region21
    $region20: #{decoder_layer.1} parent=1 // pred_region
      _
    $region21: #{decoder_layer.1} parent=1 // pred_fallthru
      _
    // Predicated region
    $region22: #{decoder_layer.1} parent=1 // pred_check
      _
    $region23: #{decoder_layer.1} parent=1 // pred_check_branch
      %40 = sbr.rel (0) target = $region25
    $region24: #{decoder_layer.1} parent=1 // pred_region
      _
    $region25: #{decoder_layer.1} parent=1 // pred_fallthru
      _
    // Predicated region
    $region26: #{decoder_layer.1} parent=1 // pred_check
      _
    $region27: #{decoder_layer.1} parent=1 // pred_check_branch
      %42 = sbr.rel (0) target = $region29
    $region28: #{decoder_layer.1} parent=1 // pred_region
      _
    $region29: #{decoder_layer.1} parent=1 // pred_fallthru
      _
    // Predicated region
    $region30: #{decoder_layer.1} parent=1 // pred_check
      _
    $region31: #{decoder_layer.1} parent=1 // pred_check_branch
      %44 = sbr.rel (0) target = $region33
    $region32: #{decoder_layer.1} parent=1 // pred_region
      _
    $region33: #{decoder_layer.1} parent=1 // pred_fallthru
      _
    // Predicated region
    $region34: #{decoder_layer.1} parent=1 // pred_check
      _
    $region35: #{decoder_layer.1} parent=1 // pred_check_branch
      %46 = sbr.rel (0) target = $region37
    $region36: #{decoder_layer.1} parent=1 // pred_region
      _
    $region37: #{decoder_layer.1} parent=1 // pred_fallthru
      _
    // Predicated region
    $region38: #{decoder_layer.1} parent=1 // pred_check
      _
    $region39: #{decoder_layer.1} parent=1 // pred_check_branch
      %48 = sbr.rel (0) target = $region41
    $region40: #{decoder_layer.1} parent=1 // pred_region
      _
    $region41: #{decoder_layer.1} parent=1 // pred_fallthru
      _
    // Predicated region
    $region42: #{decoder_layer.1} parent=1 // pred_check
      _
    $region43: #{decoder_layer.1} parent=1 // pred_check_branch
      %50 = sbr.rel (0) target = $region45
    $region44: #{decoder_layer.1} parent=1 // pred_region
      _
    $region45: #{decoder_layer.1} parent=1 // pred_fallthru
      _
    // Predicated region
    $region46: #{decoder_layer.1} parent=1 // pred_check
      _
    $region47: #{decoder_layer.1} parent=1 // pred_check_branch
      %52 = sbr.rel (0) target = $region49
    $region48: #{decoder_layer.1} parent=1 // pred_region
      _
    $region49: #{decoder_layer.1} parent=1 // pred_fallthru
      _
    // Predicated region
    $region50: #{decoder_layer.1} parent=1 // pred_check
      _
    $region51: #{decoder_layer.1} parent=1 // pred_check_branch
      %54 = sbr.rel (0) target = $region53
    $region52: #{decoder_layer.1} parent=1 // pred_region
      %55 = dma.done [#allocation3], 256
    $region53: #{decoder_layer.1} parent=1 // pred_fallthru
      _
    %v56 = vld [vmem:[#allocation2] sm:$0xff]
    %v57 = vld [vmem:[#allocation2 + $0x8] sm:$0xff]
    %v58 = vld [vmem:[%s1] sm:$0xff]
    %v59 = vld [vmem:[%s1 + $0x8] sm:$0xff]
    %v60 = vld [vmem:[%s1 + $0x10] sm:$0xff]
    %v61 = vld [vmem:[%s1 + $0x18] sm:$0xff]
    %v62 = vld [vmem:[%s2] sm:$0x1]
    %v64 = vlaneseq
    %v65 = vshrl.u32 %v64, 7
    %v66 = vsub.s32 0, %v65
    %v67 = vrot.slane %v62, %v66
    %vm69 = vcmask 261120
    %v71 = vsel %vm69, %v56, 0
    %v74 = vsel %vm69, %v57, 0
    %76 = vmatprep.subr.mxu0 0.0
    %77 = vmatpush1.msra.mxu0 0.0
    %78 = vmatprep.subr.mxu0 0.0
    %79 = vmatpush1.msra.mxu0 0.0
    %80 = vmatprep.subr.mxu0 0.0
    %81 = vmatpush1.msra.mxu0 0.0
    %82 = vmatprep.subr.mxu0 0.0
    %83 = vmatpush1.msra.mxu0 0.0
    %84 = vmatprep.subr.mxu0 0.0
    %85 = vmatpush1.msra.mxu0 0.0
    %86 = vmatprep.subr.mxu0 0.0
    %87 = vmatpush1.msra.mxu0 0.0
    %88 = vmatprep.subr.mxu0 0.0
    %89 = vmatpush1.msra.mxu0 0.0
    %90 = vmatprep.subr.mxu0 0.0
    %91 = vmatpush1.msra.mxu0 0.0
    %92 = vmatprep.subr.mxu0 0.0
    %93 = vmatpush1.msra.mxu0 0.0
    %94 = vmatprep.subr.mxu0 0.0
    %95 = vmatpush1.msra.mxu0 0.0
    %96 = vmatprep.subr.mxu0 0.0
    %97 = vmatpush1.msra.mxu0 0.0
    %98 = vmatprep.subr.mxu0 0.0
    %99 = vmatpush1.msra.mxu0 0.0
    %100 = vmatprep.subr.mxu0 0.0
    %101 = vmatpush1.msra.mxu0 %v61
    %102 = vmatprep.subr.mxu0 0.0
    %103 = vmatpush1.msra.mxu0 %v60
    %104 = vmatprep.subr.mxu0 0.0
    %105 = vmatpush1.msra.mxu0 %v59
    %106 = vmatprep.subr.mxu0 0.0
    %107 = vmatpush1.msra.mxu0 %v58
    %108 = vmatprep.subr.mxu0 0.0
    %109 = vmatpush2.msra.mxu0 0.0
    %110 = vmatprep.subr.mxu0 0.0
    %111 = vmatpush2.msra.mxu0 0.0
    %112 = vmatprep.subr.mxu0 0.0
    %113 = vmatpush2.msra.mxu0 0.0
    %114 = vmatprep.subr.mxu0 0.0
    %115 = vmatpush2.msra.mxu0 0.0
    %116 = vmatprep.subr.mxu0 0.0
    %117 = vmatpush2.msra.mxu0 0.0
    %118 = vmatprep.subr.mxu0 0.0
    %119 = vmatpush2.msra.mxu0 0.0
    %120 = vmatprep.subr.mxu0 0.0
    %121 = vmatpush2.msra.mxu0 0.0
    %122 = vmatprep.subr.mxu0 0.0
    %123 = vmatpush2.msra.mxu0 0.0
    %124 = vmatprep.subr.mxu0 0.0
    %125 = vmatpush2.msra.mxu0 0.0
    %126 = vmatprep.subr.mxu0 0.0
    %127 = vmatpush2.msra.mxu0 0.0
    %128 = vmatprep.subr.mxu0 0.0
    %129 = vmatpush2.msra.mxu0 0.0
    %130 = vmatprep.subr.mxu0 0.0
    %131 = vmatpush2.msra.mxu0 0.0
    %132 = vmatprep.subr.mxu0 0.0
    %133 = vmatpush2.msra.mxu0 0.0
    %134 = vmatprep.subr.mxu0 0.0
    %135 = vmatpush2.msra.mxu0 0.0
    %136 = vmatprep.subr.mxu0 0.0
    %137 = vmatpush2.msra.mxu0 0.0
    %138 = vmatprep.subr.mxu0 0.0
    %139 = vmatpush2.msra.mxu0 0.0
    %140 = vmatprep.mubr.f32.mxu0 0.0
    %141 = vmatmul.mubr.f32.gmra.mxu0 %v71
    %v142 = vpop.f32.mrf.mxu0
    %v143 = vadd.f32 %v67, %v142
    %v144 = vpop.f32.mrf.mxu0
    %145 = vmatprep.mubr.f32.mxu0 0.0
    %146 = vmatmul.mubr.f32.gmra.mxu0 %v74
    %v147 = vpop.f32.mrf.mxu0
    %v148 = vadd.f32 %v67, %v147
    %v149 = vpop.f32.mrf.mxu0
    %150 = vdwg.mxu0
    %v151 = vmul.f32 %v143, 0.35355338
    %v152 = vmul.f32 %v148, 0.35355338
    %v153 = vlaneseq
    %v154 = vshrl.u32 %v153, 7
    %v155 = vadd.s32 %v154, 8
    %v156 = vlaneseq
    %v157 = vand.u32 %v156, 127
    %v158 = vand.u32 %v154, 1
    %v159 = vand.u32 %v155, 1
    %v160 = vand.u32 %v157, 1
    %vm161 = vcmp.eq.s32.totalorder %v158, %v160
    %vm162 = vcmp.eq.s32.totalorder %v159, %v160
    %v163 = vsel %vm161, 0.0, -1e+30
    %v164 = vsel %vm162, 0.0, -1e+30
    %v165 = vld [vmem:[%s3] sm:$0xff]
    %v166 = vld [vmem:[%s3 + $0x8] sm:$0xff]
    %v167 = vld [vmem:[%s3 + $0x10] sm:$0xff]
    %v168 = vld [vmem:[%s3 + $0x18] sm:$0xff]
    %171 = vrot.lane.b32.xlu0 %v143, 96
    %v172 = vpop.permute.xlu0 %171
    %173 = vrot.lane.b32.xlu0 %v148, 96
    %v174 = vpop.permute.xlu0 %173
    %vm175 = vcmask 64512
    %v177 = vsel %vm175, %v151, 0
    %v180 = vsel %vm175, %v152, 0
    %v182 = vsel %vm175, %v172, 0
    %v184 = vsel %vm175, %v174, 0
    %186 = vmatprep.subr.mxu0 0.0
    %187 = vmatpush1.xpose.msra.mxu0 0.0
    %188 = vmatprep.subr.mxu0 0.0
    %189 = vmatpush1.xpose.msra.mxu0 0.0
    %190 = vmatprep.subr.mxu0 0.0
    %191 = vmatpush1.xpose.msra.mxu0 0.0
    %192 = vmatprep.subr.mxu0 0.0
    %193 = vmatpush1.xpose.msra.mxu0 0.0
    %194 = vmatprep.subr.mxu0 0.0
    %195 = vmatpush1.xpose.msra.mxu0 0.0
    %196 = vmatprep.subr.mxu0 0.0
    %197 = vmatpush1.xpose.msra.mxu0 0.0
    %198 = vmatprep.subr.mxu0 0.0
    %199 = vmatpush1.xpose.msra.mxu0 0.0
    %200 = vmatprep.subr.mxu0 0.0
    %201 = vmatpush1.xpose.msra.mxu0 0.0
    %202 = vmatprep.subr.mxu0 0.0
    %203 = vmatpush1.xpose.msra.mxu0 0.0
    %204 = vmatprep.subr.mxu0 0.0
    %205 = vmatpush1.xpose.msra.mxu0 0.0
    %206 = vmatprep.subr.mxu0 0.0
    %207 = vmatpush1.xpose.msra.mxu0 0.0
    %208 = vmatprep.subr.mxu0 0.0
    %209 = vmatpush1.xpose.msra.mxu0 0.0
    %210 = vmatprep.subr.mxu0 0.0
    %211 = vmatpush1.xpose.msra.mxu0 0.0
    %212 = vmatprep.subr.mxu0 0.0
    %213 = vmatpush1.xpose.msra.mxu0 0.0
    %214 = vmatprep.subr.mxu0 0.0
    %215 = vmatpush1.xpose.msra.mxu0 %v184
    %216 = vmatprep.subr.mxu0 0.0
    %217 = vmatpush1.xpose.msra.mxu0 %v182
    %218 = vmatprep.subr.mxu0 0.0
    %219 = vmatpush2.xpose.msra.mxu0 0.0
    %220 = vmatprep.subr.mxu0 0.0
    %221 = vmatpush2.xpose.msra.mxu0 0.0
    %222 = vmatprep.subr.mxu0 0.0
    %223 = vmatpush2.xpose.msra.mxu0 0.0
    %224 = vmatprep.subr.mxu0 0.0
    %225 = vmatpush2.xpose.msra.mxu0 0.0
    %226 = vmatprep.subr.mxu0 0.0
    %227 = vmatpush2.xpose.msra.mxu0 0.0
    %228 = vmatprep.subr.mxu0 0.0
    %229 = vmatpush2.xpose.msra.mxu0 0.0
    %230 = vmatprep.subr.mxu0 0.0
    %231 = vmatpush2.xpose.msra.mxu0 0.0
    %232 = vmatprep.subr.mxu0 0.0
    %233 = vmatpush2.xpose.msra.mxu0 0.0
    %234 = vmatprep.subr.mxu0 0.0
    %235 = vmatpush2.xpose.msra.mxu0 0.0
    %236 = vmatprep.subr.mxu0 0.0
    %237 = vmatpush2.xpose.msra.mxu0 0.0
    %238 = vmatprep.subr.mxu0 0.0
    %239 = vmatpush2.xpose.msra.mxu0 0.0
    %240 = vmatprep.subr.mxu0 0.0
    %241 = vmatpush2.xpose.msra.mxu0 0.0
    %242 = vmatprep.subr.mxu0 0.0
    %243 = vmatpush2.xpose.msra.mxu0 0.0
    %244 = vmatprep.subr.mxu0 0.0
    %245 = vmatpush2.xpose.msra.mxu0 0.0
    %246 = vmatprep.subr.mxu0 0.0
    %247 = vmatpush2.xpose.msra.mxu0 0.0
    %248 = vmatprep.subr.mxu0 0.0
    %249 = vmatpush2.xpose.msra.mxu0 0.0
    %250 = vmatprep.mubr.f32.mxu0 0.0
    %251 = vmatmul.mubr.f32.gmra.mxu0 %v177
    %v252 = vpop.f32.mrf.mxu0
    %v253 = vadd.f32 %v163, %v252
    %v254 = vpop.f32.mrf.mxu0
    %255 = vmatprep.mubr.f32.mxu0 0.0
    %256 = vmatmul.mubr.f32.gmra.mxu0 %v180
    %v257 = vpop.f32.mrf.mxu0
    %v258 = vadd.f32 %v164, %v257
    %v259 = vpop.f32.mrf.mxu0
    %260 = vdwg.mxu0
    %vm261 = vcmask 130048
    %v262 = vsel %vm261, %v253, -inf
    %263 = vmax.xlane.f32.xlu0 %v262
    %v264 = vpop.xlane.xlu0 %263
    %v265 = vsel %vm261, %v258, -inf
    %266 = vmax.xlane.f32.xlu0 %v265
    %v267 = vpop.xlane.xlu0 %266
    %v268 = vsub.f32 %v253, %v264
    %v269 = vsub.f32 %v258, %v267
    %v270 = vmul.f32 %v268, 1.442695
    %v271 = vpow.pop %v270
    %v272 = vmul.f32 %v269, 1.442695
    %v273 = vpow.pop %v272
    %v274 = vsel %vm261, %v271, 0.0
    %275 = vadd.xlane.f32.xlu0 %v274
    %v276 = vpop.xlane.xlu0 %275
    %v277 = vsel %vm261, %v273, 0.0
    %278 = vadd.xlane.f32.xlu0 %v277
    %v279 = vpop.xlane.xlu0 %278
    %v280 = vrcp.pop %v276
    %v281 = vrcp.pop %v279
    %v282 = vmul.f32 %v271, %v280
    %v283 = vmul.f32 %v273, %v281
    %284 = vrot.lane.b32.xlu0 %v143, 64
    %v285 = vpop.permute.xlu0 %284
    %286 = vrot.lane.b32.xlu0 %v148, 64
    %v287 = vpop.permute.xlu0 %286
    %v291 = vsel %vm261, %v282, 0
    %v294 = vsel %vm261, %v283, 0
    %296 = vmatprep.subr.mxu0 0.0
    %297 = vmatpush1.msra.mxu0 0.0
    %298 = vmatprep.subr.mxu0 0.0
    %299 = vmatpush1.msra.mxu0 0.0
    %300 = vmatprep.subr.mxu0 0.0
    %301 = vmatpush1.msra.mxu0 0.0
    %302 = vmatprep.subr.mxu0 0.0
    %303 = vmatpush1.msra.mxu0 0.0
    %304 = vmatprep.subr.mxu0 0.0
    %305 = vmatpush1.msra.mxu0 0.0
    %306 = vmatprep.subr.mxu0 0.0
    %307 = vmatpush1.msra.mxu0 0.0
    %308 = vmatprep.subr.mxu0 0.0
    %309 = vmatpush1.msra.mxu0 0.0
    %310 = vmatprep.subr.mxu0 0.0
    %311 = vmatpush1.msra.mxu0 0.0
    %312 = vmatprep.subr.mxu0 0.0
    %313 = vmatpush1.msra.mxu0 0.0
    %314 = vmatprep.subr.mxu0 0.0
    %315 = vmatpush1.msra.mxu0 0.0
    %316 = vmatprep.subr.mxu0 0.0
    %317 = vmatpush1.msra.mxu0 0.0
    %318 = vmatprep.subr.mxu0 0.0
    %319 = vmatpush1.msra.mxu0 0.0
    %320 = vmatprep.subr.mxu0 0.0
    %321 = vmatpush1.msra.mxu0 0.0
    %322 = vmatprep.subr.mxu0 0.0
    %323 = vmatpush1.msra.mxu0 0.0
    %324 = vmatprep.subr.mxu0 0.0
    %325 = vmatpush1.msra.mxu0 %v287
    %326 = vmatprep.subr.mxu0 0.0
    %327 = vmatpush1.msra.mxu0 %v285
    %328 = vmatprep.subr.mxu0 0.0
    %329 = vmatpush2.msra.mxu0 0.0
    %330 = vmatprep.subr.mxu0 0.0
    %331 = vmatpush2.msra.mxu0 0.0
    %332 = vmatprep.subr.mxu0 0.0
    %333 = vmatpush2.msra.mxu0 0.0
    %334 = vmatprep.subr.mxu0 0.0
    %335 = vmatpush2.msra.mxu0 0.0
    %336 = vmatprep.subr.mxu0 0.0
    %337 = vmatpush2.msra.mxu0 0.0
    %338 = vmatprep.subr.mxu0 0.0
    %339 = vmatpush2.msra.mxu0 0.0
    %340 = vmatprep.subr.mxu0 0.0
    %341 = vmatpush2.msra.mxu0 0.0
    %342 = vmatprep.subr.mxu0 0.0
    %343 = vmatpush2.msra.mxu0 0.0
    %344 = vmatprep.subr.mxu0 0.0
    %345 = vmatpush2.msra.mxu0 0.0
    %346 = vmatprep.subr.mxu0 0.0
    %347 = vmatpush2.msra.mxu0 0.0
    %348 = vmatprep.subr.mxu0 0.0
    %349 = vmatpush2.msra.mxu0 0.0
    %350 = vmatprep.subr.mxu0 0.0
    %351 = vmatpush2.msra.mxu0 0.0
    %352 = vmatprep.subr.mxu0 0.0
    %353 = vmatpush2.msra.mxu0 0.0
    %354 = vmatprep.subr.mxu0 0.0
    %355 = vmatpush2.msra.mxu0 0.0
    %356 = vmatprep.subr.mxu0 0.0
    %357 = vmatpush2.msra.mxu0 0.0
    %358 = vmatprep.subr.mxu0 0.0
    %359 = vmatpush2.msra.mxu0 0.0
    %360 = vmatprep.mubr.f32.mxu0 0.0
    %361 = vmatmul.mubr.f32.gmra.mxu0 %v291
    %v362 = vpop.f32.mrf.mxu0
    %v363 = vadd.f32 0.0, %v362
    %v364 = vpop.f32.mrf.mxu0
    %365 = vmatprep.mubr.f32.mxu0 0.0
    %366 = vmatmul.mubr.f32.gmra.mxu0 %v294
    %v367 = vpop.f32.mrf.mxu0
    %v368 = vadd.f32 0.0, %v367
    %v369 = vpop.f32.mrf.mxu0
    %370 = vdwg.mxu0
    %371 = vrot.lane.b32.xlu0 %v151, 120
    %v372 = vpop.permute.xlu0 %371
    %373 = vrot.lane.b32.xlu0 %v152, 120
    %v374 = vpop.permute.xlu0 %373
    %375 = vrot.lane.b32.xlu0 %v143, 88
    %v376 = vpop.permute.xlu0 %375
    %377 = vrot.lane.b32.xlu0 %v148, 88
    %v378 = vpop.permute.xlu0 %377
    %v379 = vsel %vm175, %v372, 0
    %v381 = vsel %vm175, %v374, 0
    %v383 = vsel %vm175, %v376, 0
    %v385 = vsel %vm175, %v378, 0
    %387 = vmatprep.subr.mxu0 0.0
    %388 = vmatpush1.xpose.msra.mxu0 0.0
    %389 = vmatprep.subr.mxu0 0.0
    %390 = vmatpush1.xpose.msra.mxu0 0.0
    %391 = vmatprep.subr.mxu0 0.0
    %392 = vmatpush1.xpose.msra.mxu0 0.0
    %393 = vmatprep.subr.mxu0 0.0
    %394 = vmatpush1.xpose.msra.mxu0 0.0
    %395 = vmatprep.subr.mxu0 0.0
    %396 = vmatpush1.xpose.msra.mxu0 0.0
    %397 = vmatprep.subr.mxu0 0.0
    %398 = vmatpush1.xpose.msra.mxu0 0.0
    %399 = vmatprep.subr.mxu0 0.0
    %400 = vmatpush1.xpose.msra.mxu0 0.0
    %401 = vmatprep.subr.mxu0 0.0
    %402 = vmatpush1.xpose.msra.mxu0 0.0
    %403 = vmatprep.subr.mxu0 0.0
    %404 = vmatpush1.xpose.msra.mxu0 0.0
    %405 = vmatprep.subr.mxu0 0.0
    %406 = vmatpush1.xpose.msra.mxu0 0.0
    %407 = vmatprep.subr.mxu0 0.0
    %408 = vmatpush1.xpose.msra.mxu0 0.0
    %409 = vmatprep.subr.mxu0 0.0
    %410 = vmatpush1.xpose.msra.mxu0 0.0
    %411 = vmatprep.subr.mxu0 0.0
    %412 = vmatpush1.xpose.msra.mxu0 0.0
    %413 = vmatprep.subr.mxu0 0.0
    %414 = vmatpush1.xpose.msra.mxu0 0.0
    %415 = vmatprep.subr.mxu0 0.0
    %416 = vmatpush1.xpose.msra.mxu0 %v385
    %417 = vmatprep.subr.mxu0 0.0
    %418 = vmatpush1.xpose.msra.mxu0 %v383
    %419 = vmatprep.subr.mxu0 0.0
    %420 = vmatpush2.xpose.msra.mxu0 0.0
    %421 = vmatprep.subr.mxu0 0.0
    %422 = vmatpush2.xpose.msra.mxu0 0.0
    %423 = vmatprep.subr.mxu0 0.0
    %424 = vmatpush2.xpose.msra.mxu0 0.0
    %425 = vmatprep.subr.mxu0 0.0
    %426 = vmatpush2.xpose.msra.mxu0 0.0
    %427 = vmatprep.subr.mxu0 0.0
    %428 = vmatpush2.xpose.msra.mxu0 0.0
    %429 = vmatprep.subr.mxu0 0.0
    %430 = vmatpush2.xpose.msra.mxu0 0.0
    %431 = vmatprep.subr.mxu0 0.0
    %432 = vmatpush2.xpose.msra.mxu0 0.0
    %433 = vmatprep.subr.mxu0 0.0
    %434 = vmatpush2.xpose.msra.mxu0 0.0
    %435 = vmatprep.subr.mxu0 0.0
    %436 = vmatpush2.xpose.msra.mxu0 0.0
    %437 = vmatprep.subr.mxu0 0.0
    %438 = vmatpush2.xpose.msra.mxu0 0.0
    %439 = vmatprep.subr.mxu0 0.0
    %440 = vmatpush2.xpose.msra.mxu0 0.0
    %441 = vmatprep.subr.mxu0 0.0
    %442 = vmatpush2.xpose.msra.mxu0 0.0
    %443 = vmatprep.subr.mxu0 0.0
    %444 = vmatpush2.xpose.msra.mxu0 0.0
    %445 = vmatprep.subr.mxu0 0.0
    %446 = vmatpush2.xpose.msra.mxu0 0.0
    %447 = vmatprep.subr.mxu0 0.0
    %448 = vmatpush2.xpose.msra.mxu0 0.0
    %449 = vmatprep.subr.mxu0 0.0
    %450 = vmatpush2.xpose.msra.mxu0 0.0
    %451 = vmatprep.mubr.f32.mxu0 0.0
    %452 = vmatmul.mubr.f32.gmra.mxu0 %v379
    %v453 = vpop.f32.mrf.mxu0
    %v454 = vadd.f32 %v163, %v453
    %v455 = vpop.f32.mrf.mxu0
    %456 = vmatprep.mubr.f32.mxu0 0.0
    %457 = vmatmul.mubr.f32.gmra.mxu0 %v381
    %v458 = vpop.f32.mrf.mxu0
    %v459 = vadd.f32 %v164, %v458
    %v460 = vpop.f32.mrf.mxu0
    %461 = vdwg.mxu0
    %v462 = vsel %vm261, %v454, -inf
    %463 = vmax.xlane.f32.xlu0 %v462
    %v464 = vpop.xlane.xlu0 %463
    %v465 = vsel %vm261, %v459, -inf
    %466 = vmax.xlane.f32.xlu0 %v465
    %v467 = vpop.xlane.xlu0 %466
    %v468 = vsub.f32 %v454, %v464
    %v469 = vsub.f32 %v459, %v467
    %v470 = vmul.f32 %v468, 1.442695
    %v471 = vpow.pop %v470
    %v472 = vmul.f32 %v469, 1.442695
    %v473 = vpow.pop %v472
    %v474 = vsel %vm261, %v471, 0.0
    %475 = vadd.xlane.f32.xlu0 %v474
    %v476 = vpop.xlane.xlu0 %475
    %v477 = vsel %vm261, %v473, 0.0
    %478 = vadd.xlane.f32.xlu0 %v477
    %v479 = vpop.xlane.xlu0 %478
    %v480 = vrcp.pop %v476
    %v481 = vrcp.pop %v479
    %v482 = vmul.f32 %v471, %v480
    %v483 = vmul.f32 %v473, %v481
    %484 = vrot.lane.b32.xlu0 %v143, 56
    %v485 = vpop.permute.xlu0 %484
    %486 = vrot.lane.b32.xlu0 %v148, 56
    %v487 = vpop.permute.xlu0 %486
    %v491 = vsel %vm261, %v482, 0
    %v494 = vsel %vm261, %v483, 0
    %496 = vmatprep.subr.mxu0 0.0
    %497 = vmatpush1.msra.mxu0 0.0
    %498 = vmatprep.subr.mxu0 0.0
    %499 = vmatpush1.msra.mxu0 0.0
    %500 = vmatprep.subr.mxu0 0.0
    %501 = vmatpush1.msra.mxu0 0.0
    %502 = vmatprep.subr.mxu0 0.0
    %503 = vmatpush1.msra.mxu0 0.0
    %504 = vmatprep.subr.mxu0 0.0
    %505 = vmatpush1.msra.mxu0 0.0
    %506 = vmatprep.subr.mxu0 0.0
    %507 = vmatpush1.msra.mxu0 0.0
    %508 = vmatprep.subr.mxu0 0.0
    %509 = vmatpush1.msra.mxu0 0.0
    %510 = vmatprep.subr.mxu0 0.0
    %511 = vmatpush1.msra.mxu0 0.0
    %512 = vmatprep.subr.mxu0 0.0
    %513 = vmatpush1.msra.mxu0 0.0
    %514 = vmatprep.subr.mxu0 0.0
    %515 = vmatpush1.msra.mxu0 0.0
    %516 = vmatprep.subr.mxu0 0.0
    %517 = vmatpush1.msra.mxu0 0.0
    %518 = vmatprep.subr.mxu0 0.0
    %519 = vmatpush1.msra.mxu0 0.0
    %520 = vmatprep.subr.mxu0 0.0
    %521 = vmatpush1.msra.mxu0 0.0
    %522 = vmatprep.subr.mxu0 0.0
    %523 = vmatpush1.msra.mxu0 0.0
    %524 = vmatprep.subr.mxu0 0.0
    %525 = vmatpush1.msra.mxu0 %v487
    %526 = vmatprep.subr.mxu0 0.0
    %527 = vmatpush1.msra.mxu0 %v485
    %528 = vmatprep.subr.mxu0 0.0
    %529 = vmatpush2.msra.mxu0 0.0
    %530 = vmatprep.subr.mxu0 0.0
    %531 = vmatpush2.msra.mxu0 0.0
    %532 = vmatprep.subr.mxu0 0.0
    %533 = vmatpush2.msra.mxu0 0.0
    %534 = vmatprep.subr.mxu0 0.0
    %535 = vmatpush2.msra.mxu0 0.0
    %536 = vmatprep.subr.mxu0 0.0
    %537 = vmatpush2.msra.mxu0 0.0
    %538 = vmatprep.subr.mxu0 0.0
    %539 = vmatpush2.msra.mxu0 0.0
    %540 = vmatprep.subr.mxu0 0.0
    %541 = vmatpush2.msra.mxu0 0.0
    %542 = vmatprep.subr.mxu0 0.0
    %543 = vmatpush2.msra.mxu0 0.0
    %544 = vmatprep.subr.mxu0 0.0
    %545 = vmatpush2.msra.mxu0 0.0
    %546 = vmatprep.subr.mxu0 0.0
    %547 = vmatpush2.msra.mxu0 0.0
    %548 = vmatprep.subr.mxu0 0.0
    %549 = vmatpush2.msra.mxu0 0.0
    %550 = vmatprep.subr.mxu0 0.0
    %551 = vmatpush2.msra.mxu0 0.0
    %552 = vmatprep.subr.mxu0 0.0
    %553 = vmatpush2.msra.mxu0 0.0
    %554 = vmatprep.subr.mxu0 0.0
    %555 = vmatpush2.msra.mxu0 0.0
    %556 = vmatprep.subr.mxu0 0.0
    %557 = vmatpush2.msra.mxu0 0.0
    %558 = vmatprep.subr.mxu0 0.0
    %559 = vmatpush2.msra.mxu0 0.0
    %560 = vmatprep.mubr.f32.mxu0 0.0
    %561 = vmatmul.mubr.f32.gmra.mxu0 %v491
    %v562 = vpop.f32.mrf.mxu0
    %v563 = vadd.f32 0.0, %v562
    %v564 = vpop.f32.mrf.mxu0
    %565 = vmatprep.mubr.f32.mxu0 0.0
    %566 = vmatmul.mubr.f32.gmra.mxu0 %v494
    %v567 = vpop.f32.mrf.mxu0
    %v568 = vadd.f32 0.0, %v567
    %v569 = vpop.f32.mrf.mxu0
    %570 = vdwg.mxu0
    %v572 = vsel %vm175, %v563, 0
    %v575 = vsel %vm175, %v568, 0
    %577 = vmatprep.subr.mxu0 0.0
    %578 = vmatpush1.msra.mxu0 0.0
    %579 = vmatprep.subr.mxu0 0.0
    %580 = vmatpush1.msra.mxu0 0.0
    %581 = vmatprep.subr.mxu0 0.0
    %582 = vmatpush1.msra.mxu0 0.0
    %583 = vmatprep.subr.mxu0 0.0
    %584 = vmatpush1.msra.mxu0 0.0
    %585 = vmatprep.subr.mxu0 0.0
    %586 = vmatpush1.msra.mxu0 0.0
    %587 = vmatprep.subr.mxu0 0.0
    %588 = vmatpush1.msra.mxu0 0.0
    %589 = vmatprep.subr.mxu0 0.0
    %590 = vmatpush1.msra.mxu0 0.0
    %591 = vmatprep.subr.mxu0 0.0
    %592 = vmatpush1.msra.mxu0 0.0
    %593 = vmatprep.subr.mxu0 0.0
    %594 = vmatpush1.msra.mxu0 0.0
    %595 = vmatprep.subr.mxu0 0.0
    %596 = vmatpush1.msra.mxu0 0.0
    %597 = vmatprep.subr.mxu0 0.0
    %598 = vmatpush1.msra.mxu0 0.0
    %599 = vmatprep.subr.mxu0 0.0
    %600 = vmatpush1.msra.mxu0 0.0
    %601 = vmatprep.subr.mxu0 0.0
    %602 = vmatpush1.msra.mxu0 0.0
    %603 = vmatprep.subr.mxu0 0.0
    %604 = vmatpush1.msra.mxu0 0.0
    %605 = vmatprep.subr.mxu0 0.0
    %606 = vmatpush1.msra.mxu0 0.0
    %607 = vmatprep.subr.mxu0 0.0
    %608 = vmatpush1.msra.mxu0 %v166
    %609 = vmatprep.subr.mxu0 0.0
    %610 = vmatpush2.msra.mxu0 0.0
    %611 = vmatprep.subr.mxu0 0.0
    %612 = vmatpush2.msra.mxu0 0.0
    %613 = vmatprep.subr.mxu0 0.0
    %614 = vmatpush2.msra.mxu0 0.0
    %615 = vmatprep.subr.mxu0 0.0
    %616 = vmatpush2.msra.mxu0 0.0
    %617 = vmatprep.subr.mxu0 0.0
    %618 = vmatpush2.msra.mxu0 0.0
    %619 = vmatprep.subr.mxu0 0.0
    %620 = vmatpush2.msra.mxu0 0.0
    %621 = vmatprep.subr.mxu0 0.0
    %622 = vmatpush2.msra.mxu0 0.0
    %623 = vmatprep.subr.mxu0 0.0
    %624 = vmatpush2.msra.mxu0 0.0
    %625 = vmatprep.subr.mxu0 0.0
    %626 = vmatpush2.msra.mxu0 0.0
    %627 = vmatprep.subr.mxu0 0.0
    %628 = vmatpush2.msra.mxu0 0.0
    %629 = vmatprep.subr.mxu0 0.0
    %630 = vmatpush2.msra.mxu0 0.0
    %631 = vmatprep.subr.mxu0 0.0
    %632 = vmatpush2.msra.mxu0 0.0
    %633 = vmatprep.subr.mxu0 0.0
    %634 = vmatpush2.msra.mxu0 0.0
    %635 = vmatprep.subr.mxu0 0.0
    %636 = vmatpush2.msra.mxu0 0.0
    %637 = vmatprep.subr.mxu0 0.0
    %638 = vmatpush2.msra.mxu0 0.0
    %639 = vmatprep.subr.mxu0 0.0
    %640 = vmatpush2.msra.mxu0 0.0
    %641 = vmatprep.mubr.f32.mxu0 0.0
    %642 = vmatmul.mubr.f32.gmra.mxu0 %v572
    %v643 = vpop.f32.mrf.mxu0
    %v644 = vadd.f32 0.0, %v643
    %v645 = vpop.f32.mrf.mxu0
    %646 = vmatprep.mubr.f32.mxu0 0.0
    %647 = vmatmul.mubr.f32.gmra.mxu0 %v575
    %v648 = vpop.f32.mrf.mxu0
    %v649 = vadd.f32 0.0, %v648
    %v650 = vpop.f32.mrf.mxu0
    %651 = vdwg.mxu0
    %v653 = vsel %vm175, %v363, 0
    %v656 = vsel %vm175, %v368, 0
    %658 = vmatprep.subr.mxu0 0.0
    %659 = vmatpush1.msra.mxu0 0.0
    %660 = vmatprep.subr.mxu0 0.0
    %661 = vmatpush1.msra.mxu0 0.0
    %662 = vmatprep.subr.mxu0 0.0
    %663 = vmatpush1.msra.mxu0 0.0
    %664 = vmatprep.subr.mxu0 0.0
    %665 = vmatpush1.msra.mxu0 0.0
    %666 = vmatprep.subr.mxu0 0.0
    %667 = vmatpush1.msra.mxu0 0.0
    %668 = vmatprep.subr.mxu0 0.0
    %669 = vmatpush1.msra.mxu0 0.0
    %670 = vmatprep.subr.mxu0 0.0
    %671 = vmatpush1.msra.mxu0 0.0
    %672 = vmatprep.subr.mxu0 0.0
    %673 = vmatpush1.msra.mxu0 0.0
    %674 = vmatprep.subr.mxu0 0.0
    %675 = vmatpush1.msra.mxu0 0.0
    %676 = vmatprep.subr.mxu0 0.0
    %677 = vmatpush1.msra.mxu0 0.0
    %678 = vmatprep.subr.mxu0 0.0
    %679 = vmatpush1.msra.mxu0 0.0
    %680 = vmatprep.subr.mxu0 0.0
    %681 = vmatpush1.msra.mxu0 0.0
    %682 = vmatprep.subr.mxu0 0.0
    %683 = vmatpush1.msra.mxu0 0.0
    %684 = vmatprep.subr.mxu0 0.0
    %685 = vmatpush1.msra.mxu0 0.0
    %686 = vmatprep.subr.mxu0 0.0
    %687 = vmatpush1.msra.mxu0 0.0
    %688 = vmatprep.subr.mxu0 0.0
    %689 = vmatpush1.msra.mxu0 %v165
    %690 = vmatprep.subr.mxu0 0.0
    %691 = vmatpush2.msra.mxu0 0.0
    %692 = vmatprep.subr.mxu0 0.0
    %693 = vmatpush2.msra.mxu0 0.0
    %694 = vmatprep.subr.mxu0 0.0
    %695 = vmatpush2.msra.mxu0 0.0
    %696 = vmatprep.subr.mxu0 0.0
    %697 = vmatpush2.msra.mxu0 0.0
    %698 = vmatprep.subr.mxu0 0.0
    %699 = vmatpush2.msra.mxu0 0.0
    %700 = vmatprep.subr.mxu0 0.0
    %701 = vmatpush2.msra.mxu0 0.0
    %702 = vmatprep.subr.mxu0 0.0
    %703 = vmatpush2.msra.mxu0 0.0
    %704 = vmatprep.subr.mxu0 0.0
    %705 = vmatpush2.msra.mxu0 0.0
    %706 = vmatprep.subr.mxu0 0.0
    %707 = vmatpush2.msra.mxu0 0.0
    %708 = vmatprep.subr.mxu0 0.0
    %709 = vmatpush2.msra.mxu0 0.0
    %710 = vmatprep.subr.mxu0 0.0
    %711 = vmatpush2.msra.mxu0 0.0
    %712 = vmatprep.subr.mxu0 0.0
    %713 = vmatpush2.msra.mxu0 0.0
    %714 = vmatprep.subr.mxu0 0.0
    %715 = vmatpush2.msra.mxu0 0.0
    %716 = vmatprep.subr.mxu0 0.0
    %717 = vmatpush2.msra.mxu0 0.0
    %718 = vmatprep.subr.mxu0 0.0
    %719 = vmatpush2.msra.mxu0 0.0
    %720 = vmatprep.subr.mxu0 0.0
    %721 = vmatpush2.msra.mxu0 0.0
    %722 = vmatprep.mubr.f32.mxu0 0.0
    %723 = vmatmul.mubr.f32.gmra.mxu0 %v653
    %v724 = vpop.f32.mrf.mxu0
    %v725 = vadd.f32 %v644, %v724
    %v726 = vpop.f32.mrf.mxu0
    %727 = vmatprep.mubr.f32.mxu0 0.0
    %728 = vmatmul.mubr.f32.gmra.mxu0 %v656
    %v729 = vpop.f32.mrf.mxu0
    %v730 = vadd.f32 %v649, %v729
    %v731 = vpop.f32.mrf.mxu0
    %732 = vdwg.mxu0
    %733 = vrot.lane.b32.xlu0 %v151, 112
    %v734 = vpop.permute.xlu0 %733
    %735 = vrot.lane.b32.xlu0 %v152, 112
    %v736 = vpop.permute.xlu0 %735
    %737 = vrot.lane.b32.xlu0 %v143, 80
    %v738 = vpop.permute.xlu0 %737
    %739 = vrot.lane.b32.xlu0 %v148, 80
    %v740 = vpop.permute.xlu0 %739
    %v741 = vsel %vm175, %v734, 0
    %v743 = vsel %vm175, %v736, 0
    %v745 = vsel %vm175, %v738, 0
    %v747 = vsel %vm175, %v740, 0
    %749 = vmatprep.subr.mxu0 0.0
    %750 = vmatpush1.xpose.msra.mxu0 0.0
    %751 = vmatprep.subr.mxu0 0.0
    %752 = vmatpush1.xpose.msra.mxu0 0.0
    %753 = vmatprep.subr.mxu0 0.0
    %754 = vmatpush1.xpose.msra.mxu0 0.0
    %755 = vmatprep.subr.mxu0 0.0
    %756 = vmatpush1.xpose.msra.mxu0 0.0
    %757 = vmatprep.subr.mxu0 0.0
    %758 = vmatpush1.xpose.msra.mxu0 0.0
    %759 = vmatprep.subr.mxu0 0.0
    %760 = vmatpush1.xpose.msra.mxu0 0.0
    %761 = vmatprep.subr.mxu0 0.0
    %762 = vmatpush1.xpose.msra.mxu0 0.0
    %763 = vmatprep.subr.mxu0 0.0
    %764 = vmatpush1.xpose.msra.mxu0 0.0
    %765 = vmatprep.subr.mxu0 0.0
    %766 = vmatpush1.xpose.msra.mxu0 0.0
    %767 = vmatprep.subr.mxu0 0.0
    %768 = vmatpush1.xpose.msra.mxu0 0.0
    %769 = vmatprep.subr.mxu0 0.0
    %770 = vmatpush1.xpose.msra.mxu0 0.0
    %771 = vmatprep.subr.mxu0 0.0
    %772 = vmatpush1.xpose.msra.mxu0 0.0
    %773 = vmatprep.subr.mxu0 0.0
    %774 = vmatpush1.xpose.msra.mxu0 0.0
    %775 = vmatprep.subr.mxu0 0.0
    %776 = vmatpush1.xpose.msra.mxu0 0.0
    %777 = vmatprep.subr.mxu0 0.0
    %778 = vmatpush1.xpose.msra.mxu0 %v747
    %779 = vmatprep.subr.mxu0 0.0
    %780 = vmatpush1.xpose.msra.mxu0 %v745
    %781 = vmatprep.subr.mxu0 0.0
    %782 = vmatpush2.xpose.msra.mxu0 0.0
    %783 = vmatprep.subr.mxu0 0.0
    %784 = vmatpush2.xpose.msra.mxu0 0.0
    %785 = vmatprep.subr.mxu0 0.0
    %786 = vmatpush2.xpose.msra.mxu0 0.0
    %787 = vmatprep.subr.mxu0 0.0
    %788 = vmatpush2.xpose.msra.mxu0 0.0
    %789 = vmatprep.subr.mxu0 0.0
    %790 = vmatpush2.xpose.msra.mxu0 0.0
    %791 = vmatprep.subr.mxu0 0.0
    %792 = vmatpush2.xpose.msra.mxu0 0.0
    %793 = vmatprep.subr.mxu0 0.0
    %794 = vmatpush2.xpose.msra.mxu0 0.0
    %795 = vmatprep.subr.mxu0 0.0
    %796 = vmatpush2.xpose.msra.mxu0 0.0
    %797 = vmatprep.subr.mxu0 0.0
    %798 = vmatpush2.xpose.msra.mxu0 0.0
    %799 = vmatprep.subr.mxu0 0.0
    %800 = vmatpush2.xpose.msra.mxu0 0.0
    %801 = vmatprep.subr.mxu0 0.0
    %802 = vmatpush2.xpose.msra.mxu0 0.0
    %803 = vmatprep.subr.mxu0 0.0
    %804 = vmatpush2.xpose.msra.mxu0 0.0
    %805 = vmatprep.subr.mxu0 0.0
    %806 = vmatpush2.xpose.msra.mxu0 0.0
    %807 = vmatprep.subr.mxu0 0.0
    %808 = vmatpush2.xpose.msra.mxu0 0.0
    %809 = vmatprep.subr.mxu0 0.0
    %810 = vmatpush2.xpose.msra.mxu0 0.0
    %811 = vmatprep.subr.mxu0 0.0
    %812 = vmatpush2.xpose.msra.mxu0 0.0
    %813 = vmatprep.mubr.f32.mxu0 0.0
    %814 = vmatmul.mubr.f32.gmra.mxu0 %v741
    %v815 = vpop.f32.mrf.mxu0
    %v816 = vadd.f32 %v163, %v815
    %v817 = vpop.f32.mrf.mxu0
    %818 = vmatprep.mubr.f32.mxu0 0.0
    %819 = vmatmul.mubr.f32.gmra.mxu0 %v743
    %v820 = vpop.f32.mrf.mxu0
    %v821 = vadd.f32 %v164, %v820
    %v822 = vpop.f32.mrf.mxu0
    %823 = vdwg.mxu0
    %v824 = vsel %vm261, %v816, -inf
    %825 = vmax.xlane.f32.xlu0 %v824
    %v826 = vpop.xlane.xlu0 %825
    %v827 = vsel %vm261, %v821, -inf
    %828 = vmax.xlane.f32.xlu0 %v827
    %v829 = vpop.xlane.xlu0 %828
    %v830 = vsub.f32 %v816, %v826
    %v831 = vsub.f32 %v821, %v829
    %v832 = vmul.f32 %v830, 1.442695
    %v833 = vpow.pop %v832
    %v834 = vmul.f32 %v831, 1.442695
    %v835 = vpow.pop %v834
    %v836 = vsel %vm261, %v833, 0.0
    %837 = vadd.xlane.f32.xlu0 %v836
    %v838 = vpop.xlane.xlu0 %837
    %v839 = vsel %vm261, %v835, 0.0
    %840 = vadd.xlane.f32.xlu0 %v839
    %v841 = vpop.xlane.xlu0 %840
    %v842 = vrcp.pop %v838
    %v843 = vrcp.pop %v841
    %v844 = vmul.f32 %v833, %v842
    %v845 = vmul.f32 %v835, %v843
    %846 = vrot.lane.b32.xlu0 %v143, 48
    %v847 = vpop.permute.xlu0 %846
    %848 = vrot.lane.b32.xlu0 %v148, 48
    %v849 = vpop.permute.xlu0 %848
    %v853 = vsel %vm261, %v844, 0
    %v856 = vsel %vm261, %v845, 0
    %858 = vmatprep.subr.mxu0 0.0
    %859 = vmatpush1.msra.mxu0 0.0
    %860 = vmatprep.subr.mxu0 0.0
    %861 = vmatpush1.msra.mxu0 0.0
    %862 = vmatprep.subr.mxu0 0.0
    %863 = vmatpush1.msra.mxu0 0.0
    %864 = vmatprep.subr.mxu0 0.0
    %865 = vmatpush1.msra.mxu0 0.0
    %866 = vmatprep.subr.mxu0 0.0
    %867 = vmatpush1.msra.mxu0 0.0
    %868 = vmatprep.subr.mxu0 0.0
    %869 = vmatpush1.msra.mxu0 0.0
    %870 = vmatprep.subr.mxu0 0.0
    %871 = vmatpush1.msra.mxu0 0.0
    %872 = vmatprep.subr.mxu0 0.0
    %873 = vmatpush1.msra.mxu0 0.0
    %874 = vmatprep.subr.mxu0 0.0
    %875 = vmatpush1.msra.mxu0 0.0
    %876 = vmatprep.subr.mxu0 0.0
    %877 = vmatpush1.msra.mxu0 0.0
    %878 = vmatprep.subr.mxu0 0.0
    %879 = vmatpush1.msra.mxu0 0.0
    %880 = vmatprep.subr.mxu0 0.0
    %881 = vmatpush1.msra.mxu0 0.0
    %882 = vmatprep.subr.mxu0 0.0
    %883 = vmatpush1.msra.mxu0 0.0
    %884 = vmatprep.subr.mxu0 0.0
    %885 = vmatpush1.msra.mxu0 0.0
    %886 = vmatprep.subr.mxu0 0.0
    %887 = vmatpush1.msra.mxu0 %v849
    %888 = vmatprep.subr.mxu0 0.0
    %889 = vmatpush1.msra.mxu0 %v847
    %890 = vmatprep.subr.mxu0 0.0
    %891 = vmatpush2.msra.mxu0 0.0
    %892 = vmatprep.subr.mxu0 0.0
    %893 = vmatpush2.msra.mxu0 0.0
    %894 = vmatprep.subr.mxu0 0.0
    %895 = vmatpush2.msra.mxu0 0.0
    %896 = vmatprep.subr.mxu0 0.0
    %897 = vmatpush2.msra.mxu0 0.0
    %898 = vmatprep.subr.mxu0 0.0
    %899 = vmatpush2.msra.mxu0 0.0
    %900 = vmatprep.subr.mxu0 0.0
    %901 = vmatpush2.msra.mxu0 0.0
    %902 = vmatprep.subr.mxu0 0.0
    %903 = vmatpush2.msra.mxu0 0.0
    %904 = vmatprep.subr.mxu0 0.0
    %905 = vmatpush2.msra.mxu0 0.0
    %906 = vmatprep.subr.mxu0 0.0
    %907 = vmatpush2.msra.mxu0 0.0
    %908 = vmatprep.subr.mxu0 0.0
    %909 = vmatpush2.msra.mxu0 0.0
    %910 = vmatprep.subr.mxu0 0.0
    %911 = vmatpush2.msra.mxu0 0.0
    %912 = vmatprep.subr.mxu0 0.0
    %913 = vmatpush2.msra.mxu0 0.0
    %914 = vmatprep.subr.mxu0 0.0
    %915 = vmatpush2.msra.mxu0 0.0
    %916 = vmatprep.subr.mxu0 0.0
    %917 = vmatpush2.msra.mxu0 0.0
    %918 = vmatprep.subr.mxu0 0.0
    %919 = vmatpush2.msra.mxu0 0.0
    %920 = vmatprep.subr.mxu0 0.0
    %921 = vmatpush2.msra.mxu0 0.0
    %922 = vmatprep.mubr.f32.mxu0 0.0
    %923 = vmatmul.mubr.f32.gmra.mxu0 %v853
    %v924 = vpop.f32.mrf.mxu0
    %v925 = vadd.f32 0.0, %v924
    %v926 = vpop.f32.mrf.mxu0
    %927 = vmatprep.mubr.f32.mxu0 0.0
    %928 = vmatmul.mubr.f32.gmra.mxu0 %v856
    %v929 = vpop.f32.mrf.mxu0
    %v930 = vadd.f32 0.0, %v929
    %v931 = vpop.f32.mrf.mxu0
    %932 = vdwg.mxu0
    %v934 = vsel %vm175, %v925, 0
    %v937 = vsel %vm175, %v930, 0
    %939 = vmatprep.subr.mxu0 0.0
    %940 = vmatpush1.msra.mxu0 0.0
    %941 = vmatprep.subr.mxu0 0.0
    %942 = vmatpush1.msra.mxu0 0.0
    %943 = vmatprep.subr.mxu0 0.0
    %944 = vmatpush1.msra.mxu0 0.0
    %945 = vmatprep.subr.mxu0 0.0
    %946 = vmatpush1.msra.mxu0 0.0
    %947 = vmatprep.subr.mxu0 0.0
    %948 = vmatpush1.msra.mxu0 0.0
    %949 = vmatprep.subr.mxu0 0.0
    %950 = vmatpush1.msra.mxu0 0.0
    %951 = vmatprep.subr.mxu0 0.0
    %952 = vmatpush1.msra.mxu0 0.0
    %953 = vmatprep.subr.mxu0 0.0
    %954 = vmatpush1.msra.mxu0 0.0
    %955 = vmatprep.subr.mxu0 0.0
    %956 = vmatpush1.msra.mxu0 0.0
    %957 = vmatprep.subr.mxu0 0.0
    %958 = vmatpush1.msra.mxu0 0.0
    %959 = vmatprep.subr.mxu0 0.0
    %960 = vmatpush1.msra.mxu0 0.0
    %961 = vmatprep.subr.mxu0 0.0
    %962 = vmatpush1.msra.mxu0 0.0
    %963 = vmatprep.subr.mxu0 0.0
    %964 = vmatpush1.msra.mxu0 0.0
    %965 = vmatprep.subr.mxu0 0.0
    %966 = vmatpush1.msra.mxu0 0.0
    %967 = vmatprep.subr.mxu0 0.0
    %968 = vmatpush1.msra.mxu0 0.0
    %969 = vmatprep.subr.mxu0 0.0
    %970 = vmatpush1.msra.mxu0 %v167
    %971 = vmatprep.subr.mxu0 0.0
    %972 = vmatpush2.msra.mxu0 0.0
    %973 = vmatprep.subr.mxu0 0.0
    %974 = vmatpush2.msra.mxu0 0.0
    %975 = vmatprep.subr.mxu0 0.0
    %976 = vmatpush2.msra.mxu0 0.0
    %977 = vmatprep.subr.mxu0 0.0
    %978 = vmatpush2.msra.mxu0 0.0
    %979 = vmatprep.subr.mxu0 0.0
    %980 = vmatpush2.msra.mxu0 0.0
    %981 = vmatprep.subr.mxu0 0.0
    %982 = vmatpush2.msra.mxu0 0.0
    %983 = vmatprep.subr.mxu0 0.0
    %984 = vmatpush2.msra.mxu0 0.0
    %985 = vmatprep.subr.mxu0 0.0
    %986 = vmatpush2.msra.mxu0 0.0
    %987 = vmatprep.subr.mxu0 0.0
    %988 = vmatpush2.msra.mxu0 0.0
    %989 = vmatprep.subr.mxu0 0.0
    %990 = vmatpush2.msra.mxu0 0.0
    %991 = vmatprep.subr.mxu0 0.0
    %992 = vmatpush2.msra.mxu0 0.0
    %993 = vmatprep.subr.mxu0 0.0
    %994 = vmatpush2.msra.mxu0 0.0
    %995 = vmatprep.subr.mxu0 0.0
    %996 = vmatpush2.msra.mxu0 0.0
    %997 = vmatprep.subr.mxu0 0.0
    %998 = vmatpush2.msra.mxu0 0.0
    %999 = vmatprep.subr.mxu0 0.0
    %1000 = vmatpush2.msra.mxu0 0.0
    %1001 = vmatprep.subr.mxu0 0.0
    %1002 = vmatpush2.msra.mxu0 0.0
    %1003 = vmatprep.mubr.f32.mxu0 0.0
    %1004 = vmatmul.mubr.f32.gmra.mxu0 %v934
    %v1005 = vpop.f32.mrf.mxu0
    %v1006 = vadd.f32 0.0, %v1005
    %v1007 = vpop.f32.mrf.mxu0
    %1008 = vmatprep.mubr.f32.mxu0 0.0
    %1009 = vmatmul.mubr.f32.gmra.mxu0 %v937
    %v1010 = vpop.f32.mrf.mxu0
    %v1011 = vadd.f32 0.0, %v1010
    %v1012 = vpop.f32.mrf.mxu0
    %1013 = vdwg.mxu0
    %v1014 = vadd.f32 %v725, %v1006
    %v1015 = vadd.f32 %v730, %v1011
    %1016 = vrot.lane.b32.xlu0 %v151, 104
    %v1017 = vpop.permute.xlu0 %1016
    %1018 = vrot.lane.b32.xlu0 %v152, 104
    %v1019 = vpop.permute.xlu0 %1018
    %1020 = vrot.lane.b32.xlu0 %v143, 72
    %v1021 = vpop.permute.xlu0 %1020
    %1022 = vrot.lane.b32.xlu0 %v148, 72
    %v1023 = vpop.permute.xlu0 %1022
    %v1024 = vsel %vm175, %v1017, 0
    %v1026 = vsel %vm175, %v1019, 0
    %v1028 = vsel %vm175, %v1021, 0
    %v1030 = vsel %vm175, %v1023, 0
    %1032 = vmatprep.subr.mxu0 0.0
    %1033 = vmatpush1.xpose.msra.mxu0 0.0
    %1034 = vmatprep.subr.mxu0 0.0
    %1035 = vmatpush1.xpose.msra.mxu0 0.0
    %1036 = vmatprep.subr.mxu0 0.0
    %1037 = vmatpush1.xpose.msra.mxu0 0.0
    %1038 = vmatprep.subr.mxu0 0.0
    %1039 = vmatpush1.xpose.msra.mxu0 0.0
    %1040 = vmatprep.subr.mxu0 0.0
    %1041 = vmatpush1.xpose.msra.mxu0 0.0
    %1042 = vmatprep.subr.mxu0 0.0
    %1043 = vmatpush1.xpose.msra.mxu0 0.0
    %1044 = vmatprep.subr.mxu0 0.0
    %1045 = vmatpush1.xpose.msra.mxu0 0.0
    %1046 = vmatprep.subr.mxu0 0.0
    %1047 = vmatpush1.xpose.msra.mxu0 0.0
    %1048 = vmatprep.subr.mxu0 0.0
    %1049 = vmatpush1.xpose.msra.mxu0 0.0
    %1050 = vmatprep.subr.mxu0 0.0
    %1051 = vmatpush1.xpose.msra.mxu0 0.0
    %1052 = vmatprep.subr.mxu0 0.0
    %1053 = vmatpush1.xpose.msra.mxu0 0.0
    %1054 = vmatprep.subr.mxu0 0.0
    %1055 = vmatpush1.xpose.msra.mxu0 0.0
    %1056 = vmatprep.subr.mxu0 0.0
    %1057 = vmatpush1.xpose.msra.mxu0 0.0
    %1058 = vmatprep.subr.mxu0 0.0
    %1059 = vmatpush1.xpose.msra.mxu0 0.0
    %1060 = vmatprep.subr.mxu0 0.0
    %1061 = vmatpush1.xpose.msra.mxu0 %v1030
    %1062 = vmatprep.subr.mxu0 0.0
    %1063 = vmatpush1.xpose.msra.mxu0 %v1028
    %1064 = vmatprep.subr.mxu0 0.0
    %1065 = vmatpush2.xpose.msra.mxu0 0.0
    %1066 = vmatprep.subr.mxu0 0.0
    %1067 = vmatpush2.xpose.msra.mxu0 0.0
    %1068 = vmatprep.subr.mxu0 0.0
    %1069 = vmatpush2.xpose.msra.mxu0 0.0
    %1070 = vmatprep.subr.mxu0 0.0
    %1071 = vmatpush2.xpose.msra.mxu0 0.0
    %1072 = vmatprep.subr.mxu0 0.0
    %1073 = vmatpush2.xpose.msra.mxu0 0.0
    %1074 = vmatprep.subr.mxu0 0.0
    %1075 = vmatpush2.xpose.msra.mxu0 0.0
    %1076 = vmatprep.subr.mxu0 0.0
    %1077 = vmatpush2.xpose.msra.mxu0 0.0
    %1078 = vmatprep.subr.mxu0 0.0
    %1079 = vmatpush2.xpose.msra.mxu0 0.0
    %1080 = vmatprep.subr.mxu0 0.0
    %1081 = vmatpush2.xpose.msra.mxu0 0.0
    %1082 = vmatprep.subr.mxu0 0.0
    %1083 = vmatpush2.xpose.msra.mxu0 0.0
    %1084 = vmatprep.subr.mxu0 0.0
    %1085 = vmatpush2.xpose.msra.mxu0 0.0
    %1086 = vmatprep.subr.mxu0 0.0
    %1087 = vmatpush2.xpose.msra.mxu0 0.0
    %1088 = vmatprep.subr.mxu0 0.0
    %1089 = vmatpush2.xpose.msra.mxu0 0.0
    %1090 = vmatprep.subr.mxu0 0.0
    %1091 = vmatpush2.xpose.msra.mxu0 0.0
    %1092 = vmatprep.subr.mxu0 0.0
    %1093 = vmatpush2.xpose.msra.mxu0 0.0
    %1094 = vmatprep.subr.mxu0 0.0
    %1095 = vmatpush2.xpose.msra.mxu0 0.0
    %1096 = vmatprep.mubr.f32.mxu0 0.0
    %1097 = vmatmul.mubr.f32.gmra.mxu0 %v1024
    %v1098 = vpop.f32.mrf.mxu0
    %v1099 = vadd.f32 %v163, %v1098
    %v1100 = vpop.f32.mrf.mxu0
    %1101 = vmatprep.mubr.f32.mxu0 0.0
    %1102 = vmatmul.mubr.f32.gmra.mxu0 %v1026
    %v1103 = vpop.f32.mrf.mxu0
    %v1104 = vadd.f32 %v164, %v1103
    %v1105 = vpop.f32.mrf.mxu0
    %1106 = vdwg.mxu0
    %v1107 = vsel %vm261, %v1099, -inf
    %1108 = vmax.xlane.f32.xlu0 %v1107
    %v1109 = vpop.xlane.xlu0 %1108
    %v1110 = vsel %vm261, %v1104, -inf
    %1111 = vmax.xlane.f32.xlu0 %v1110
    %v1112 = vpop.xlane.xlu0 %1111
    %v1113 = vsub.f32 %v1099, %v1109
    %v1114 = vsub.f32 %v1104, %v1112
    %v1115 = vmul.f32 %v1113, 1.442695
    %v1116 = vpow.pop %v1115
    %v1117 = vmul.f32 %v1114, 1.442695
    %v1118 = vpow.pop %v1117
    %v1119 = vsel %vm261, %v1116, 0.0
    %1120 = vadd.xlane.f32.xlu0 %v1119
    %v1121 = vpop.xlane.xlu0 %1120
    %v1122 = vsel %vm261, %v1118, 0.0
    %1123 = vadd.xlane.f32.xlu0 %v1122
    %v1124 = vpop.xlane.xlu0 %1123
    %v1125 = vrcp.pop %v1121
    %v1126 = vrcp.pop %v1124
    %v1127 = vmul.f32 %v1116, %v1125
    %v1128 = vmul.f32 %v1118, %v1126
    %1129 = vrot.lane.b32.xlu0 %v143, 40
    %v1130 = vpop.permute.xlu0 %1129
    %1131 = vrot.lane.b32.xlu0 %v148, 40
    %v1132 = vpop.permute.xlu0 %1131
    %v1136 = vsel %vm261, %v1127, 0
    %v1139 = vsel %vm261, %v1128, 0
    %1141 = vmatprep.subr.mxu0 0.0
    %1142 = vmatpush1.msra.mxu0 0.0
    %1143 = vmatprep.subr.mxu0 0.0
    %1144 = vmatpush1.msra.mxu0 0.0
    %1145 = vmatprep.subr.mxu0 0.0
    %1146 = vmatpush1.msra.mxu0 0.0
    %1147 = vmatprep.subr.mxu0 0.0
    %1148 = vmatpush1.msra.mxu0 0.0
    %1149 = vmatprep.subr.mxu0 0.0
    %1150 = vmatpush1.msra.mxu0 0.0
    %1151 = vmatprep.subr.mxu0 0.0
    %1152 = vmatpush1.msra.mxu0 0.0
    %1153 = vmatprep.subr.mxu0 0.0
    %1154 = vmatpush1.msra.mxu0 0.0
    %1155 = vmatprep.subr.mxu0 0.0
    %1156 = vmatpush1.msra.mxu0 0.0
    %1157 = vmatprep.subr.mxu0 0.0
    %1158 = vmatpush1.msra.mxu0 0.0
    %1159 = vmatprep.subr.mxu0 0.0
    %1160 = vmatpush1.msra.mxu0 0.0
    %1161 = vmatprep.subr.mxu0 0.0
    %1162 = vmatpush1.msra.mxu0 0.0
    %1163 = vmatprep.subr.mxu0 0.0
    %1164 = vmatpush1.msra.mxu0 0.0
    %1165 = vmatprep.subr.mxu0 0.0
    %1166 = vmatpush1.msra.mxu0 0.0
    %1167 = vmatprep.subr.mxu0 0.0
    %1168 = vmatpush1.msra.mxu0 0.0
    %1169 = vmatprep.subr.mxu0 0.0
    %1170 = vmatpush1.msra.mxu0 %v1132
    %1171 = vmatprep.subr.mxu0 0.0
    %1172 = vmatpush1.msra.mxu0 %v1130
    %1173 = vmatprep.subr.mxu0 0.0
    %1174 = vmatpush2.msra.mxu0 0.0
    %1175 = vmatprep.subr.mxu0 0.0
    %1176 = vmatpush2.msra.mxu0 0.0
    %1177 = vmatprep.subr.mxu0 0.0
    %1178 = vmatpush2.msra.mxu0 0.0
    %1179 = vmatprep.subr.mxu0 0.0
    %1180 = vmatpush2.msra.mxu0 0.0
    %1181 = vmatprep.subr.mxu0 0.0
    %1182 = vmatpush2.msra.mxu0 0.0
    %1183 = vmatprep.subr.mxu0 0.0
    %1184 = vmatpush2.msra.mxu0 0.0
    %1185 = vmatprep.subr.mxu0 0.0
    %1186 = vmatpush2.msra.mxu0 0.0
    %1187 = vmatprep.subr.mxu0 0.0
    %1188 = vmatpush2.msra.mxu0 0.0
    %1189 = vmatprep.subr.mxu0 0.0
    %1190 = vmatpush2.msra.mxu0 0.0
    %1191 = vmatprep.subr.mxu0 0.0
    %1192 = vmatpush2.msra.mxu0 0.0
    %1193 = vmatprep.subr.mxu0 0.0
    %1194 = vmatpush2.msra.mxu0 0.0
    %1195 = vmatprep.subr.mxu0 0.0
    %1196 = vmatpush2.msra.mxu0 0.0
    %1197 = vmatprep.subr.mxu0 0.0
    %1198 = vmatpush2.msra.mxu0 0.0
    %1199 = vmatprep.subr.mxu0 0.0
    %1200 = vmatpush2.msra.mxu0 0.0
    %1201 = vmatprep.subr.mxu0 0.0
    %1202 = vmatpush2.msra.mxu0 0.0
    %1203 = vmatprep.subr.mxu0 0.0
    %1204 = vmatpush2.msra.mxu0 0.0
    %1205 = vmatprep.mubr.f32.mxu0 0.0
    %1206 = vmatmul.mubr.f32.gmra.mxu0 %v1136
    %v1207 = vpop.f32.mrf.mxu0
    %v1208 = vadd.f32 0.0, %v1207
    %v1209 = vpop.f32.mrf.mxu0
    %1210 = vmatprep.mubr.f32.mxu0 0.0
    %1211 = vmatmul.mubr.f32.gmra.mxu0 %v1139
    %v1212 = vpop.f32.mrf.mxu0
    %v1213 = vadd.f32 0.0, %v1212
    %v1214 = vpop.f32.mrf.mxu0
    %1215 = vdwg.mxu0
    %v1217 = vsel %vm175, %v1208, 0
    %v1220 = vsel %vm175, %v1213, 0
    %1222 = vmatprep.subr.mxu0 0.0
    %1223 = vmatpush1.msra.mxu0 0.0
    %1224 = vmatprep.subr.mxu0 0.0
    %1225 = vmatpush1.msra.mxu0 0.0
    %1226 = vmatprep.subr.mxu0 0.0
    %1227 = vmatpush1.msra.mxu0 0.0
    %1228 = vmatprep.subr.mxu0 0.0
    %1229 = vmatpush1.msra.mxu0 0.0
    %1230 = vmatprep.subr.mxu0 0.0
    %1231 = vmatpush1.msra.mxu0 0.0
    %1232 = vmatprep.subr.mxu0 0.0
    %1233 = vmatpush1.msra.mxu0 0.0
    %1234 = vmatprep.subr.mxu0 0.0
    %1235 = vmatpush1.msra.mxu0 0.0
    %1236 = vmatprep.subr.mxu0 0.0
    %1237 = vmatpush1.msra.mxu0 0.0
    %1238 = vmatprep.subr.mxu0 0.0
    %1239 = vmatpush1.msra.mxu0 0.0
    %1240 = vmatprep.subr.mxu0 0.0
    %1241 = vmatpush1.msra.mxu0 0.0
    %1242 = vmatprep.subr.mxu0 0.0
    %1243 = vmatpush1.msra.mxu0 0.0
    %1244 = vmatprep.subr.mxu0 0.0
    %1245 = vmatpush1.msra.mxu0 0.0
    %1246 = vmatprep.subr.mxu0 0.0
    %1247 = vmatpush1.msra.mxu0 0.0
    %1248 = vmatprep.subr.mxu0 0.0
    %1249 = vmatpush1.msra.mxu0 0.0
    %1250 = vmatprep.subr.mxu0 0.0
    %1251 = vmatpush1.msra.mxu0 0.0
    %1252 = vmatprep.subr.mxu0 0.0
    %1253 = vmatpush1.msra.mxu0 %v168
    %1254 = vmatprep.subr.mxu0 0.0
    %1255 = vmatpush2.msra.mxu0 0.0
    %1256 = vmatprep.subr.mxu0 0.0
    %1257 = vmatpush2.msra.mxu0 0.0
    %1258 = vmatprep.subr.mxu0 0.0
    %1259 = vmatpush2.msra.mxu0 0.0
    %1260 = vmatprep.subr.mxu0 0.0
    %1261 = vmatpush2.msra.mxu0 0.0
    %1262 = vmatprep.subr.mxu0 0.0
    %1263 = vmatpush2.msra.mxu0 0.0
    %1264 = vmatprep.subr.mxu0 0.0
    %1265 = vmatpush2.msra.mxu0 0.0
    %1266 = vmatprep.subr.mxu0 0.0
    %1267 = vmatpush2.msra.mxu0 0.0
    %1268 = vmatprep.subr.mxu0 0.0
    %1269 = vmatpush2.msra.mxu0 0.0
    %1270 = vmatprep.subr.mxu0 0.0
    %1271 = vmatpush2.msra.mxu0 0.0
    %1272 = vmatprep.subr.mxu0 0.0
    %1273 = vmatpush2.msra.mxu0 0.0
    %1274 = vmatprep.subr.mxu0 0.0
    %1275 = vmatpush2.msra.mxu0 0.0
    %1276 = vmatprep.subr.mxu0 0.0
    %1277 = vmatpush2.msra.mxu0 0.0
    %1278 = vmatprep.subr.mxu0 0.0
    %1279 = vmatpush2.msra.mxu0 0.0
    %1280 = vmatprep.subr.mxu0 0.0
    %1281 = vmatpush2.msra.mxu0 0.0
    %1282 = vmatprep.subr.mxu0 0.0
    %1283 = vmatpush2.msra.mxu0 0.0
    %1284 = vmatprep.subr.mxu0 0.0
    %1285 = vmatpush2.msra.mxu0 0.0
    %1286 = vmatprep.mubr.f32.mxu0 0.0
    %1287 = vmatmul.mubr.f32.gmra.mxu0 %v1217
    %v1288 = vpop.f32.mrf.mxu0
    %v1289 = vadd.f32 0.0, %v1288
    %v1290 = vpop.f32.mrf.mxu0
    %1291 = vmatprep.mubr.f32.mxu0 0.0
    %1292 = vmatmul.mubr.f32.gmra.mxu0 %v1220
    %v1293 = vpop.f32.mrf.mxu0
    %v1294 = vadd.f32 0.0, %v1293
    %v1295 = vpop.f32.mrf.mxu0
    %1296 = vdwg.mxu0
    %v1297 = vadd.f32 %v1014, %v1289
    %v1298 = vadd.f32 %v1015, %v1294
    %v1299 = vadd.f32 %v56, %v1297
    %v1300 = vadd.f32 %v57, %v1298
    %v1301 = vld [vmem:[%s4] sm:$0x1]
    %v1303 = vlaneseq
    %v1304 = vshrl.u32 %v1303, 7
    %v1305 = vsub.s32 0, %v1304
    %v1306 = vrot.slane %v1301, %v1305
    %v1308 = vadd.f32 %v1299, %v1306
    %v1309 = vadd.f32 %v1300, %v1306
    %v1310 = vld [vmem:[%s8] sm:$0x1]
    %v1311 = vld [vmem:[%s9] sm:$0x1]
    %v1312 = vsel %vm69, %v1308, 0.0
    %1313 = vadd.xlane.f32.xlu0 %v1312
    %v1314 = vpop.xlane.xlu0 %1313
    %v1315 = vsel %vm69, %v1309, 0.0
    %1316 = vadd.xlane.f32.xlu0 %v1315
    %v1317 = vpop.xlane.xlu0 %1316
    %v1318 = vrcp.pop 32.0
    %v1319 = vmul.f32 %v1314, %v1318
    %v1320 = vmul.f32 %v1317, %v1318
    %v1321 = vsub.f32 %v1308, %v1319
    %v1322 = vsub.f32 %v1309, %v1320
    %v1323 = vmul.f32 %v1321, %v1321
    %v1324 = vmul.f32 %v1322, %v1322
    %v1325 = vsel %vm69, %v1323, 0.0
    %1326 = vadd.xlane.f32.xlu0 %v1325
    %v1327 = vpop.xlane.xlu0 %1326
    %v1328 = vsel %vm69, %v1324, 0.0
    %1329 = vadd.xlane.f32.xlu0 %v1328
    %v1330 = vpop.xlane.xlu0 %1329
    %v1331 = vmul.f32 %v1327, %v1318
    %v1332 = vmul.f32 %v1330, %v1318
    %v1333 = vadd.f32 %v1331, 1e-05
    %v1334 = vadd.f32 %v1332, 1e-05
    %v1335 = vrsqrt.pop %v1333
    %v1336 = vrsqrt.pop %v1334
    %v1337 = vmul.f32 %v1321, %v1335
    %v1338 = vmul.f32 %v1322, %v1336
    %v1340 = vlaneseq
    %v1341 = vshrl.u32 %v1340, 7
    %v1342 = vsub.s32 0, %v1341
    %v1343 = vrot.slane %v1310, %v1342
    %v1345 = vmul.f32 %v1337, %v1343
    %v1346 = vmul.f32 %v1338, %v1343
    %v1348 = vlaneseq
    %v1349 = vshrl.u32 %v1348, 7
    %v1350 = vsub.s32 0, %v1349
    %v1351 = vrot.slane %v1311, %v1350
    %v1353 = vadd.f32 %v1345, %v1351
    %v1354 = vadd.f32 %v1346, %v1351
    %v1355 = vld [vmem:[%s5] sm:$0xff]
    %v1356 = vld [vmem:[%s5 + $0x8] sm:$0xff]
    %v1357 = vld [vmem:[%s5 + $0x10] sm:$0xff]
    %v1358 = vld [vmem:[%s5 + $0x18] sm:$0xff]
    %v1359 = vld [vmem:[%s6] sm:$0x1]
    %v1361 = vlaneseq
    %v1362 = vshrl.u32 %v1361, 7
    %v1363 = vsub.s32 0, %v1362
    %v1364 = vrot.slane %v1359, %v1363
    %v1367 = vsel %vm69, %v1353, 0
    %v1370 = vsel %vm69, %v1354, 0
    %1372 = vmatprep.subr.mxu0 0.0
    %1373 = vmatpush1.msra.mxu0 0.0
    %1374 = vmatprep.subr.mxu0 0.0
    %1375 = vmatpush1.msra.mxu0 0.0
    %1376 = vmatprep.subr.mxu0 0.0
    %1377 = vmatpush1.msra.mxu0 0.0
    %1378 = vmatprep.subr.mxu0 0.0
    %1379 = vmatpush1.msra.mxu0 0.0
    %1380 = vmatprep.subr.mxu0 0.0
    %1381 = vmatpush1.msra.mxu0 0.0
    %1382 = vmatprep.subr.mxu0 0.0
    %1383 = vmatpush1.msra.mxu0 0.0
    %1384 = vmatprep.subr.mxu0 0.0
    %1385 = vmatpush1.msra.mxu0 0.0
    %1386 = vmatprep.subr.mxu0 0.0
    %1387 = vmatpush1.msra.mxu0 0.0
    %1388 = vmatprep.subr.mxu0 0.0
    %1389 = vmatpush1.msra.mxu0 0.0
    %1390 = vmatprep.subr.mxu0 0.0
    %1391 = vmatpush1.msra.mxu0 0.0
    %1392 = vmatprep.subr.mxu0 0.0
    %1393 = vmatpush1.msra.mxu0 0.0
    %1394 = vmatprep.subr.mxu0 0.0
    %1395 = vmatpush1.msra.mxu0 0.0
    %1396 = vmatprep.subr.mxu0 0.0
    %1397 = vmatpush1.msra.mxu0 %v1358
    %1398 = vmatprep.subr.mxu0 0.0
    %1399 = vmatpush1.msra.mxu0 %v1357
    %1400 = vmatprep.subr.mxu0 0.0
    %1401 = vmatpush1.msra.mxu0 %v1356
    %1402 = vmatprep.subr.mxu0 0.0
    %1403 = vmatpush1.msra.mxu0 %v1355
    %1404 = vmatprep.subr.mxu0 0.0
    %1405 = vmatpush2.msra.mxu0 0.0
    %1406 = vmatprep.subr.mxu0 0.0
    %1407 = vmatpush2.msra.mxu0 0.0
    %1408 = vmatprep.subr.mxu0 0.0
    %1409 = vmatpush2.msra.mxu0 0.0
    %1410 = vmatprep.subr.mxu0 0.0
    %1411 = vmatpush2.msra.mxu0 0.0
    %1412 = vmatprep.subr.mxu0 0.0
    %1413 = vmatpush2.msra.mxu0 0.0
    %1414 = vmatprep.subr.mxu0 0.0
    %1415 = vmatpush2.msra.mxu0 0.0
    %1416 = vmatprep.subr.mxu0 0.0
    %1417 = vmatpush2.msra.mxu0 0.0
    %1418 = vmatprep.subr.mxu0 0.0
    %1419 = vmatpush2.msra.mxu0 0.0
    %1420 = vmatprep.subr.mxu0 0.0
    %1421 = vmatpush2.msra.mxu0 0.0
    %1422 = vmatprep.subr.mxu0 0.0
    %1423 = vmatpush2.msra.mxu0 0.0
    %1424 = vmatprep.subr.mxu0 0.0
    %1425 = vmatpush2.msra.mxu0 0.0
    %1426 = vmatprep.subr.mxu0 0.0
    %1427 = vmatpush2.msra.mxu0 0.0
    %1428 = vmatprep.subr.mxu0 0.0
    %1429 = vmatpush2.msra.mxu0 0.0
    %1430 = vmatprep.subr.mxu0 0.0
    %1431 = vmatpush2.msra.mxu0 0.0
    %1432 = vmatprep.subr.mxu0 0.0
    %1433 = vmatpush2.msra.mxu0 0.0
    %1434 = vmatprep.subr.mxu0 0.0
    %1435 = vmatpush2.msra.mxu0 0.0
    %1436 = vmatprep.mubr.f32.mxu0 0.0
    %1437 = vmatmul.mubr.f32.gmra.mxu0 %v1367
    %v1438 = vpop.f32.mrf.mxu0
    %v1439 = vadd.f32 %v1364, %v1438
    %v1440 = vpop.f32.mrf.mxu0
    %1441 = vmatprep.mubr.f32.mxu0 0.0
    %1442 = vmatmul.mubr.f32.gmra.mxu0 %v1370
    %v1443 = vpop.f32.mrf.mxu0
    %v1444 = vadd.f32 %v1364, %v1443
    %v1445 = vpop.f32.mrf.mxu0
    %1446 = vdwg.mxu0
    %v1447 = vmax.f32 %v1439, 0.0
    %v1448 = vmax.f32 %v1444, 0.0
    %v1449 = vld [vmem:[%s7] sm:$0xff]
    %v1450 = vld [vmem:[%s7 + $0x8] sm:$0xff]
    %v1451 = vld [vmem:[%s7 + $0x10] sm:$0xff]
    %v1452 = vld [vmem:[%s7 + $0x18] sm:$0xff]
    %v1453 = vld [vmem:[%s7 + $0x20] sm:$0xff]
    %v1454 = vld [vmem:[%s7 + $0x28] sm:$0xff]
    %v1455 = vld [vmem:[%s7 + $0x30] sm:$0xff]
    %v1456 = vld [vmem:[%s7 + $0x38] sm:$0xff]
    %vm1457 = vcmask 523264
    %v1459 = vsel %vm1457, %v1447, 0
    %v1462 = vsel %vm1457, %v1448, 0
    %1464 = vmatprep.subr.mxu0 0.0
    %1465 = vmatpush1.msra.mxu0 0.0
    %1466 = vmatprep.subr.mxu0 0.0
    %1467 = vmatpush1.msra.mxu0 0.0
    %1468 = vmatprep.subr.mxu0 0.0
    %1469 = vmatpush1.msra.mxu0 0.0
    %1470 = vmatprep.subr.mxu0 0.0
    %1471 = vmatpush1.msra.mxu0 0.0
    %1472 = vmatprep.subr.mxu0 0.0
    %1473 = vmatpush1.msra.mxu0 0.0
    %1474 = vmatprep.subr.mxu0 0.0
    %1475 = vmatpush1.msra.mxu0 0.0
    %1476 = vmatprep.subr.mxu0 0.0
    %1477 = vmatpush1.msra.mxu0 0.0
    %1478 = vmatprep.subr.mxu0 0.0
    %1479 = vmatpush1.msra.mxu0 0.0
    %1480 = vmatprep.subr.mxu0 0.0
    %1481 = vmatpush1.msra.mxu0 %v1456
    %1482 = vmatprep.subr.mxu0 0.0
    %1483 = vmatpush1.msra.mxu0 %v1455
    %1484 = vmatprep.subr.mxu0 0.0
    %1485 = vmatpush1.msra.mxu0 %v1454
    %1486 = vmatprep.subr.mxu0 0.0
    %1487 = vmatpush1.msra.mxu0 %v1453
    %1488 = vmatprep.subr.mxu0 0.0
    %1489 = vmatpush1.msra.mxu0 %v1452
    %1490 = vmatprep.subr.mxu0 0.0
    %1491 = vmatpush1.msra.mxu0 %v1451
    %1492 = vmatprep.subr.mxu0 0.0
    %1493 = vmatpush1.msra.mxu0 %v1450
    %1494 = vmatprep.subr.mxu0 0.0
    %1495 = vmatpush1.msra.mxu0 %v1449
    %1496 = vmatprep.subr.mxu0 0.0
    %1497 = vmatpush2.msra.mxu0 0.0
    %1498 = vmatprep.subr.mxu0 0.0
    %1499 = vmatpush2.msra.mxu0 0.0
    %1500 = vmatprep.subr.mxu0 0.0
    %1501 = vmatpush2.msra.mxu0 0.0
    %1502 = vmatprep.subr.mxu0 0.0
    %1503 = vmatpush2.msra.mxu0 0.0
    %1504 = vmatprep.subr.mxu0 0.0
    %1505 = vmatpush2.msra.mxu0 0.0
    %1506 = vmatprep.subr.mxu0 0.0
    %1507 = vmatpush2.msra.mxu0 0.0
    %1508 = vmatprep.subr.mxu0 0.0
    %1509 = vmatpush2.msra.mxu0 0.0
    %1510 = vmatprep.subr.mxu0 0.0
    %1511 = vmatpush2.msra.mxu0 0.0
    %1512 = vmatprep.subr.mxu0 0.0
    %1513 = vmatpush2.msra.mxu0 0.0
    %1514 = vmatprep.subr.mxu0 0.0
    %1515 = vmatpush2.msra.mxu0 0.0
    %1516 = vmatprep.subr.mxu0 0.0
    %1517 = vmatpush2.msra.mxu0 0.0
    %1518 = vmatprep.subr.mxu0 0.0
    %1519 = vmatpush2.msra.mxu0 0.0
    %1520 = vmatprep.subr.mxu0 0.0
    %1521 = vmatpush2.msra.mxu0 0.0
    %1522 = vmatprep.subr.mxu0 0.0
    %1523 = vmatpush2.msra.mxu0 0.0
    %1524 = vmatprep.subr.mxu0 0.0
    %1525 = vmatpush2.msra.mxu0 0.0
    %1526 = vmatprep.subr.mxu0 0.0
    %1527 = vmatpush2.msra.mxu0 0.0
    %1528 = vmatprep.mubr.f32.mxu0 0.0
    %1529 = vmatmul.mubr.f32.gmra.mxu0 %v1459
    %v1530 = vpop.f32.mrf.mxu0
    %v1531 = vadd.f32 0.0, %v1530
    %v1532 = vpop.f32.mrf.mxu0
    %1533 = vmatprep.mubr.f32.mxu0 0.0
    %1534 = vmatmul.mubr.f32.gmra.mxu0 %v1462
    %v1535 = vpop.f32.mrf.mxu0
    %v1536 = vadd.f32 0.0, %v1535
    %v1537 = vpop.f32.mrf.mxu0
    %1538 = vdwg.mxu0
    %v1539 = vadd.f32 %v1353, %v1531
    %v1540 = vadd.f32 %v1354, %v1536
    %v1541 = vld [vmem:[%s10] sm:$0x1]
    %v1542 = vld [vmem:[%s11] sm:$0x1]
    %v1543 = vsel %vm69, %v1539, 0.0
    %1544 = vadd.xlane.f32.xlu0 %v1543
    %v1545 = vpop.xlane.xlu0 %1544
    %v1546 = vsel %vm69, %v1540, 0.0
    %1547 = vadd.xlane.f32.xlu0 %v1546
    %v1548 = vpop.xlane.xlu0 %1547
    %v1549 = vmul.f32 %v1545, %v1318
    %v1550 = vmul.f32 %v1548, %v1318
    %v1551 = vsub.f32 %v1539, %v1549
    %v1552 = vsub.f32 %v1540, %v1550
    %v1553 = vmul.f32 %v1551, %v1551
    %v1554 = vmul.f32 %v1552, %v1552
    %v1555 = vsel %vm69, %v1553, 0.0
    %1556 = vadd.xlane.f32.xlu0 %v1555
    %v1557 = vpop.xlane.xlu0 %1556
    %v1558 = vsel %vm69, %v1554, 0.0
    %1559 = vadd.xlane.f32.xlu0 %v1558
    %v1560 = vpop.xlane.xlu0 %1559
    %v1561 = vmul.f32 %v1557, %v1318
    %v1562 = vmul.f32 %v1560, %v1318
    %v1563 = vadd.f32 %v1561, 1e-05
    %v1564 = vadd.f32 %v1562, 1e-05
    %v1565 = vrsqrt.pop %v1563
    %v1566 = vrsqrt.pop %v1564
    %v1567 = vmul.f32 %v1551, %v1565
    %v1568 = vmul.f32 %v1552, %v1566
    %v1570 = vlaneseq
    %v1571 = vshrl.u32 %v1570, 7
    %v1572 = vsub.s32 0, %v1571
    %v1573 = vrot.slane %v1541, %v1572
    %v1575 = vmul.f32 %v1567, %v1573
    %v1576 = vmul.f32 %v1568, %v1573
    %v1578 = vlaneseq
    %v1579 = vshrl.u32 %v1578, 7
    %v1580 = vsub.s32 0, %v1579
    %v1581 = vrot.slane %v1542, %v1580
    %v1583 = vadd.f32 %v1575, %v1581
    %v1584 = vadd.f32 %v1576, %v1581
    %1585 = vst.msk [vmem:[#allocation5] sm:$0xff] %vm69, %v1583
    %1586 = vst.msk [vmem:[#allocation5 + $0x8] sm:$0xff] %vm69, %v1584
    // Predicated region
    $region54: #{decoder_layer.1} parent=1 // pred_check
      _
    $region55: #{decoder_layer.1} parent=1 // pred_check_branch
      %1588 = sbr.rel (0) target = $region57
    $region56: #{decoder_layer.1} parent=1 // pred_region
      %s1590 = ssub.s32 256, 256
      %1591 = vsyncadd [#allocation4], %s1590
      %s1592 = sshll.u32 [#allocation5], 4
      %s1593 = int_to_ptr.vmem [resolvable:$true] %s1592
      %1598 = dma.vmem_to_hbm [thread:$0]  %s1593, 256, %s12, [#allocation4], 128, 128, 8
    $region57: #{decoder_layer.1} parent=1 // pred_fallthru
      _
    // Predicated region
    $region58: #{decoder_layer.1} parent=1 // pred_check
      _
    $region59: #{decoder_layer.1} parent=1 // pred_check_branch
      %1600 = sbr.rel (0) target = $region61
    $region60: #{decoder_layer.1} parent=1 // pred_region
      %1601 = dma.done [#allocation4], 256
    $region61: #{decoder_layer.1} parent=1 // pred_fallthru
      _
    %1602 = vsyncpa [#allocation3], 1
    %1603 = vsyncpa [#allocation4], 1

</llo_original>
